<compile_context>
chip_gen: v5e
topology: v5e:2x2
jax: 0.10.0
libtpu: 0.0.40
codegen_flags: <defaults>
</compile_context>

<pallas_src>
import jax
import jax.numpy as jnp
import numpy as np
from jax.experimental import pallas as pl
from jax.experimental.pallas import tpu as pltpu

MAX_IDS = 8                      # static id-table slots (unused slots -> sentinel -1)
_MAX_BLOCK_ELEMS = 1 << 20       # cap per-block voxels (bounds in-kernel intermediates)
_VMEM_LIMIT = 48 * 1024 * 1024   # scoped VMEM: safe on v5e/v6e/v7x, >> 16/32 MiB defaults

# Intensity ranges hard-coded by the torch module (Uniform(0,0.5) vs Uniform(1.5,2.1),
# background keeps scale == 1).  The three ranges are disjoint, so the onehot channel
# is a pure function of the written intensity.
_DARK_HI = 0.5
_BRIGHT_LO = 1.5


def _vessels_kernel(ids_ref, intens_ref,      # SMEM lookup tables (MAX_IDS,)
                    labels_ref,               # VMEM (TD, H, W) int8 labels
                    scale_ref, onehot_ref):   # VMEM outputs
    labels = labels_ref[...].astype(jnp.int32)       # i8 -> i32 upcast (cheap, proven path)
    scale = jnp.ones(labels.shape, jnp.float32)      # scaling_tensor (init 1 = background)

    # Unrolled per-id masked_fill_.  Ids are unique so regions are disjoint; unused
    # slots hold id == -1 which never matches, so no per-voxel activity guard needed.
    for k in range(MAX_IDS):
        scale = jnp.where(labels == ids_ref[k], intens_ref[k], scale)

    scale_ref[...] = scale

    # Channel assignment recovered exactly from the disjoint intensity ranges
    # (dark < 0.5 <= background == 1 < 1.5 <= bright).  Saves one select per id per
    # voxel vs carrying a separate class map.  onehot emitted as int8 (exact 0/1)
    # to cut HBM write bytes 4x vs f32.
    dark = scale < _DARK_HI
    bright = scale >= _BRIGHT_LO
    onehot_ref[0] = jnp.logical_not(jnp.logical_or(dark, bright)).astype(jnp.int8)  # background
    onehot_ref[1] = dark.astype(jnp.int8)                                           # dark vessels
    onehot_ref[2] = bright.astype(jnp.int8)                                         # bright vessels


def _pick_td(depth, height, width, *, min_steps=4):
    """Largest divisor of `depth` whose block fits the VMEM / vreg budgets."""
    # double-buffered VMEM bytes per D slice: labels i8 in + scale f32 + 3x onehot i8 out
    bytes_per_slice = 2 * (1 + 4 + 3) * height * width
    cap = max(1, (_VMEM_LIMIT // 2) // bytes_per_slice)
    cap = min(cap, max(1, _MAX_BLOCK_ELEMS // (height * width)))
    if depth >= min_steps:
        # keep >= min_steps grid steps so the "parallel" D axis can shard across the
        # two TensorCores on v7x and the DMA pipeline has something to overlap
        cap = min(cap, depth // min_steps)
    td = 1
    for t in range(1, depth + 1):
        if depth % t == 0 and t <= cap:
            td = t
    return td


def vessel_intensity_synth1_forward(vessel_labels, flips, ids_tbl, intens_tbl):
    """JAX/Pallas forward for VesselIntensitySynth1.

    vessel_labels : (D, H, W) integer label volume (ids must fit in int8)
    flips         : (3,) bool   realization of the three RandomFlipTransform draws
    ids_tbl       : (MAX_IDS,) int32   kept vessel ids (0 = unused slot)
    intens_tbl    : (MAX_IDS,) float32 per-slot sampled intensity
                    (dark ids in [0,0.5), bright ids in [1.5,2.1), as the module samples)
    returns (scaling_tensor (1, D, H, W) float32, onehot (3, D, H, W) int8 with exact 0/1)
    """
    D, H, W = vessel_labels.shape

    # fov.RandomFlipTransform x3 -> net per-axis flip, one fused XLA pass on int8 labels.
    # TODO(synk): Mosaic exposes no in-kernel lane/sublane reverse, so the flip cannot be
    # fused into the kernel / index_map; it stays as cheap int8 glue (1B read + 1B write).
    lab = vessel_labels.astype(jnp.int8)
    for ax in range(3):
        lab = jnp.where(flips[ax], jnp.flip(lab, axis=ax), lab)

    # Unused slots (id == 0) -> sentinel -1 so they can never match a (non-negative) voxel
    # label; removes the per-voxel slot-active guard from the kernel's id loop.
    ids_eff = jnp.where(ids_tbl == 0, -1, ids_tbl).astype(jnp.int32)
    intens_eff = intens_tbl.astype(jnp.float32)

    td = _pick_td(D, H, W)
    grid = (D // td,)
    nvox = D * H * W

    smem = pl.BlockSpec(memory_space=pltpu.MemorySpace.SMEM)
    vol = lambda blk: pl.BlockSpec((blk, H, W), lambda d: (d, 0, 0))

    scale, onehot = pl.pallas_call(
        _vessels_kernel,
        out_shape=(jax.ShapeDtypeStruct((D, H, W), jnp.float32),
                   jax.ShapeDtypeStruct((3, D, H, W), jnp.int8)),
        grid=grid,
        in_specs=[smem, smem,                       # ids / intensities
                  vol(td)],                         # flipped int8 labels
        out_specs=(vol(td),                         # scaling_tensor (f32)
                   pl.BlockSpec((3, td, H, W), lambda d: (0, d, 0, 0))),
        compiler_params=pltpu.CompilerParams(
            dimension_semantics=("parallel",),
            vmem_limit_bytes=_VMEM_LIMIT),
        cost_estimate=pl.CostEstimate(
            flops=(2 * MAX_IDS + 8) * nvox,
            transcendentals=0,
            bytes_accessed=(1 + 4 + 3) * nvox),
    )(ids_eff, intens_eff, lab)

    return scale[None], onehot


if __name__ == "__main__":
    D, H, W = 32, 32, 128
    key = jax.random.PRNGKey(0)
    k_lab, k_flip, k_hide, k_cls, k_int = jax.random.split(key, 5)

    n_total_ids = 6   # nonzero vessel ids 1..6 (0 = background)
    vessel_labels = jax.random.randint(k_lab, (D, H, W), 0, n_total_ids + 1,
                                       dtype=jnp.int32)

    # three RandomFlipTransform draws -> net per-axis flip decision (glue)
    flips = jax.random.bernoulli(k_flip, 0.5, (3,))

    # prune_labels: hide a random subset of ids; kept ids populate the SMEM table.
    # TODO(synk): torch.unique / dynamic-length id sets have no Pallas equivalent;
    # realized as a fixed MAX_IDS-slot table (unused slots hold id 0 -> sentinel -1).
    n_hide = 3                                # draw from randint(n_unique//2, n_unique-1)
    n_keep = n_total_ids - n_hide
    perm = jax.random.permutation(k_hide, jnp.arange(1, n_total_ids + 1))
    kept_ids = perm[:n_keep]

    # sample_label_intensity: coin per id -> dark U[0,0.5) (ch1) or bright U[1.5,2.1) (ch2)
    cls_bits = jax.random.bernoulli(k_cls, 0.5, (n_keep,))   # True -> dark / channel 1
    u = jax.random.uniform(k_int, (n_keep,))
    intens = jnp.where(cls_bits, 0.5 * u, 1.5 + 0.6 * u)

    ids_tbl = jnp.zeros((MAX_IDS,), jnp.int32).at[:n_keep].set(kept_ids.astype(jnp.int32))
    intens_tbl = jnp.ones((MAX_IDS,), jnp.float32).at[:n_keep].set(intens.astype(jnp.float32))

    fwd = jax.jit(vessel_intensity_synth1_forward)
    scaling_tensor, onehot = fwd(vessel_labels, flips, ids_tbl, intens_tbl)
    jax.block_until_ready((scaling_tensor, onehot))

    # ---- pure-JAX reference: onehot driven by the coin flips (like torch), not thresholds
    lab_ref = vessel_labels
    for ax in range(3):
        lab_ref = jnp.where(flips[ax], jnp.flip(lab_ref, axis=ax), lab_ref)
    scale_ref = jnp.ones((D, H, W), jnp.float32)
    dark_ref = jnp.zeros((D, H, W), bool)
    bright_ref = jnp.zeros((D, H, W), bool)
    for k in range(n_keep):
        eq = lab_ref == kept_ids[k]
        scale_ref = jnp.where(eq, intens_tbl[k], scale_ref)
        dark_ref = jnp.where(cls_bits[k], dark_ref | eq, dark_ref)
        bright_ref = jnp.where(cls_bits[k], bright_ref, bright_ref | eq)
    onehot_ref = jnp.stack([~(dark_ref | bright_ref), dark_ref, bright_ref]).astype(jnp.int8)

    assert scaling_tensor.shape == (1, D, H, W) and scaling_tensor.dtype == jnp.float32
    assert onehot.shape == (3, D, H, W)
    np.testing.assert_array_equal(np.asarray(scaling_tensor[0]), np.asarray(scale_ref))
    np.testing.assert_array_equal(np.asarray(onehot), np.asarray(onehot_ref))
    print("KERNEL_OK")
</pallas_src>

<mosaic_0001>
module attributes {stable_mosaic.version = 11 : i64} {
  func.func @_vessels_kernel(%arg0: i32, %arg1: memref<8xi32, #tpu.memory_space<smem>>, %arg2: memref<8xf32, #tpu.memory_space<smem>>, %arg3: memref<8x32x128xi8, #tpu.memory_space<vmem>>, %arg4: memref<8x32x128xf32, #tpu.memory_space<vmem>>, %arg5: memref<3x8x32x128xi8, #tpu.memory_space<vmem>>) attributes {dimension_semantics = [#tpu.dimension_semantics<parallel>], iteration_bounds = array<i64: 4>, scalar_prefetch = 0 : i64, scratch_operands = 0 : i64, tpu.core_type = #tpu.core_type<tc>, window_params = [{transform_indices = @transform_0, window_bounds = array<i64: 8>}, {transform_indices = @transform_1, window_bounds = array<i64: 8>}, {transform_indices = @transform_2, window_bounds = array<i64: 8, 32, 128>}, {transform_indices = @transform_3, window_bounds = array<i64: 8, 32, 128>}, {transform_indices = @transform_4, window_bounds = array<i64: 3, 8, 32, 128>}]} {
    %c0 = arith.constant 0 : index
    %c0_0 = arith.constant 0 : index
    %c0_1 = arith.constant 0 : index
    %0 = vector.load %arg3[%c0, %c0_0, %c0_1] : memref<8x32x128xi8, #tpu.memory_space<vmem>>, vector<8x32x128xi8>
    %1 = arith.extsi %0 : vector<8x32x128xi8> to vector<8x32x128xi32>
    %cst = arith.constant 1.000000e+00 : f32
    %2 = vector.broadcast %cst : f32 to vector<8x32x128xf32>
    %c0_2 = arith.constant 0 : index
    %3 = memref.load %arg1[%c0_2] : memref<8xi32, #tpu.memory_space<smem>>
    %4 = vector.broadcast %3 : i32 to vector<8x32x128xi32>
    %5 = arith.cmpi eq, %1, %4 : vector<8x32x128xi32>
    %c0_3 = arith.constant 0 : index
    %6 = memref.load %arg2[%c0_3] : memref<8xf32, #tpu.memory_space<smem>>
    %7 = vector.broadcast %6 : f32 to vector<8x32x128xf32>
    %8 = arith.select %5, %7, %2 : vector<8x32x128xi1>, vector<8x32x128xf32>
    %c1 = arith.constant 1 : index
    %9 = memref.load %arg1[%c1] : memref<8xi32, #tpu.memory_space<smem>>
    %10 = vector.broadcast %9 : i32 to vector<8x32x128xi32>
    %11 = arith.cmpi eq, %1, %10 : vector<8x32x128xi32>
    %c1_4 = arith.constant 1 : index
    %12 = memref.load %arg2[%c1_4] : memref<8xf32, #tpu.memory_space<smem>>
    %13 = vector.broadcast %12 : f32 to vector<8x32x128xf32>
    %14 = arith.select %11, %13, %8 : vector<8x32x128xi1>, vector<8x32x128xf32>
    %c2 = arith.constant 2 : index
    %15 = memref.load %arg1[%c2] : memref<8xi32, #tpu.memory_space<smem>>
    %16 = vector.broadcast %15 : i32 to vector<8x32x128xi32>
    %17 = arith.cmpi eq, %1, %16 : vector<8x32x128xi32>
    %c2_5 = arith.constant 2 : index
    %18 = memref.load %arg2[%c2_5] : memref<8xf32, #tpu.memory_space<smem>>
    %19 = vector.broadcast %18 : f32 to vector<8x32x128xf32>
    %20 = arith.select %17, %19, %14 : vector<8x32x128xi1>, vector<8x32x128xf32>
    %c3 = arith.constant 3 : index
    %21 = memref.load %arg1[%c3] : memref<8xi32, #tpu.memory_space<smem>>
    %22 = vector.broadcast %21 : i32 to vector<8x32x128xi32>
    %23 = arith.cmpi eq, %1, %22 : vector<8x32x128xi32>
    %c3_6 = arith.constant 3 : index
    %24 = memref.load %arg2[%c3_6] : memref<8xf32, #tpu.memory_space<smem>>
    %25 = vector.broadcast %24 : f32 to vector<8x32x128xf32>
    %26 = arith.select %23, %25, %20 : vector<8x32x128xi1>, vector<8x32x128xf32>
    %c4 = arith.constant 4 : index
    %27 = memref.load %arg1[%c4] : memref<8xi32, #tpu.memory_space<smem>>
    %28 = vector.broadcast %27 : i32 to vector<8x32x128xi32>
    %29 = arith.cmpi eq, %1, %28 : vector<8x32x128xi32>
    %c4_7 = arith.constant 4 : index
    %30 = memref.load %arg2[%c4_7] : memref<8xf32, #tpu.memory_space<smem>>
    %31 = vector.broadcast %30 : f32 to vector<8x32x128xf32>
    %32 = arith.select %29, %31, %26 : vector<8x32x128xi1>, vector<8x32x128xf32>
    %c5 = arith.constant 5 : index
    %33 = memref.load %arg1[%c5] : memref<8xi32, #tpu.memory_space<smem>>
    %34 = vector.broadcast %33 : i32 to vector<8x32x128xi32>
    %35 = arith.cmpi eq, %1, %34 : vector<8x32x128xi32>
    %c5_8 = arith.constant 5 : index
    %36 = memref.load %arg2[%c5_8] : memref<8xf32, #tpu.memory_space<smem>>
    %37 = vector.broadcast %36 : f32 to vector<8x32x128xf32>
    %38 = arith.select %35, %37, %32 : vector<8x32x128xi1>, vector<8x32x128xf32>
    %c6 = arith.constant 6 : index
    %39 = memref.load %arg1[%c6] : memref<8xi32, #tpu.memory_space<smem>>
    %40 = vector.broadcast %39 : i32 to vector<8x32x128xi32>
    %41 = arith.cmpi eq, %1, %40 : vector<8x32x128xi32>
    %c6_9 = arith.constant 6 : index
    %42 = memref.load %arg2[%c6_9] : memref<8xf32, #tpu.memory_space<smem>>
    %43 = vector.broadcast %42 : f32 to vector<8x32x128xf32>
    %44 = arith.select %41, %43, %38 : vector<8x32x128xi1>, vector<8x32x128xf32>
    %c7 = arith.constant 7 : index
    %45 = memref.load %arg1[%c7] : memref<8xi32, #tpu.memory_space<smem>>
    %46 = vector.broadcast %45 : i32 to vector<8x32x128xi32>
    %47 = arith.cmpi eq, %1, %46 : vector<8x32x128xi32>
    %c7_10 = arith.constant 7 : index
    %48 = memref.load %arg2[%c7_10] : memref<8xf32, #tpu.memory_space<smem>>
    %49 = vector.broadcast %48 : f32 to vector<8x32x128xf32>
    %50 = arith.select %47, %49, %44 : vector<8x32x128xi1>, vector<8x32x128xf32>
    %c0_11 = arith.constant 0 : index
    %c0_12 = arith.constant 0 : index
    %c0_13 = arith.constant 0 : index
    %51 = vector.load %arg4[%c0_11, %c0_12, %c0_13] : memref<8x32x128xf32, #tpu.memory_space<vmem>>, vector<8x32x128xf32>
    tpu.vector_store %arg4[%c0_11, %c0_12, %c0_13], %50 {strides = array<i32>} : memref<8x32x128xf32, #tpu.memory_space<vmem>>, vector<8x32x128xf32>,
    %cst_14 = arith.constant 5.000000e-01 : f32
    %52 = vector.broadcast %cst_14 : f32 to vector<8x32x128xf32>
    %53 = arith.cmpf olt, %50, %52 : vector<8x32x128xf32>
    %cst_15 = arith.constant 1.500000e+00 : f32
    %54 = vector.broadcast %cst_15 : f32 to vector<8x32x128xf32>
    %55 = arith.cmpf oge, %50, %54 : vector<8x32x128xf32>
    %56 = arith.ori %53, %55 : vector<8x32x128xi1>
    %cst_16 = arith.constant dense<true> : vector<8x32x128xi1>
    %57 = arith.xori %56, %cst_16 : vector<8x32x128xi1>
    %58 = arith.extui %57 : vector<8x32x128xi1> to vector<8x32x128xi8>
    %c0_17 = arith.constant 0 : index
    %c0_18 = arith.constant 0 : index
    %c0_19 = arith.constant 0 : index
    %c0_20 = arith.constant 0 : index
    %59 = vector.load %arg5[%c0_17, %c0_18, %c0_19, %c0_20] : memref<3x8x32x128xi8, #tpu.memory_space<vmem>>, vector<1x8x32x128xi8>
    %60 = vector.shape_cast %59 : vector<1x8x32x128xi8> to vector<8x32x128xi8>
    %61 = vector.shape_cast %58 : vector<8x32x128xi8> to vector<1x8x32x128xi8>
    tpu.vector_store %arg5[%c0_17, %c0_18, %c0_19, %c0_20], %61 {strides = array<i32>} : memref<3x8x32x128xi8, #tpu.memory_space<vmem>>, vector<1x8x32x128xi8>,
    %62 = arith.extui %53 : vector<8x32x128xi1> to vector<8x32x128xi8>
    %c1_21 = arith.constant 1 : index
    %c0_22 = arith.constant 0 : index
    %c0_23 = arith.constant 0 : index
    %c0_24 = arith.constant 0 : index
    %63 = vector.load %arg5[%c1_21, %c0_22, %c0_23, %c0_24] : memref<3x8x32x128xi8, #tpu.memory_space<vmem>>, vector<1x8x32x128xi8>
    %64 = vector.shape_cast %63 : vector<1x8x32x128xi8> to vector<8x32x128xi8>
    %65 = vector.shape_cast %62 : vector<8x32x128xi8> to vector<1x8x32x128xi8>
    tpu.vector_store %arg5[%c1_21, %c0_22, %c0_23, %c0_24], %65 {strides = array<i32>} : memref<3x8x32x128xi8, #tpu.memory_space<vmem>>, vector<1x8x32x128xi8>,
    %66 = arith.extui %55 : vector<8x32x128xi1> to vector<8x32x128xi8>
    %c2_25 = arith.constant 2 : index
    %c0_26 = arith.constant 0 : index
    %c0_27 = arith.constant 0 : index
    %c0_28 = arith.constant 0 : index
    %67 = vector.load %arg5[%c2_25, %c0_26, %c0_27, %c0_28] : memref<3x8x32x128xi8, #tpu.memory_space<vmem>>, vector<1x8x32x128xi8>
    %68 = vector.shape_cast %67 : vector<1x8x32x128xi8> to vector<8x32x128xi8>
    %69 = vector.shape_cast %66 : vector<8x32x128xi8> to vector<1x8x32x128xi8>
    tpu.vector_store %arg5[%c2_25, %c0_26, %c0_27, %c0_28], %69 {strides = array<i32>} : memref<3x8x32x128xi8, #tpu.memory_space<vmem>>, vector<1x8x32x128xi8>,
    return
  }
  func.func @transform_0(%arg0: i32) -> i32 {
    %c0_i32 = arith.constant 0 : i32
    %c0_i32_0 = arith.constant 0 : i32
    return %c0_i32 : i32
  }
  func.func @transform_1(%arg0: i32) -> i32 {
    %c0_i32 = arith.constant 0 : i32
    %c0_i32_0 = arith.constant 0 : i32
    return %c0_i32 : i32
  }
  func.func @transform_2(%arg0: i32) -> (i32, i32, i32) {
    %c0_i32 = arith.constant 0 : i32
    %c0_i32_0 = arith.constant 0 : i32
    %c0_i32_1 = arith.constant 0 : i32
    return %arg0, %c0_i32, %c0_i32_0 : i32, i32, i32
  }
  func.func @transform_3(%arg0: i32) -> (i32, i32, i32) {
    %c0_i32 = arith.constant 0 : i32
    %c0_i32_0 = arith.constant 0 : i32
    %c0_i32_1 = arith.constant 0 : i32
    return %arg0, %c0_i32, %c0_i32_0 : i32, i32, i32
  }
  func.func @transform_4(%arg0: i32) -> (i32, i32, i32, i32) {
    %c0_i32 = arith.constant 0 : i32
    %c0_i32_0 = arith.constant 0 : i32
    %c0_i32_1 = arith.constant 0 : i32
    %c0_i32_2 = arith.constant 0 : i32
    return %c0_i32, %arg0, %c0_i32_0, %c0_i32_1 : i32, i32, i32, i32
  }
}

</mosaic_0001>

<llo_original>
// kernel: vessel_intensity_synth1_forward.1
$region0: #{vessel_intensity_synth1_forward.1}
  #allocation0 [shape = 'u32[]', space=smem, size = 0x4, offset = 0x4, fixed_abs, tag = 'smem constant byte address 0x4 - core index']
  #allocation1 [shape = 'u32[72,128]{1,0:T(1,128)}', space=vmem, size = 0x9000, scoped, tag = 'internal scratch']
  #allocation10 [shape = 's32[]', space=sflag, size = 0x4, offset = 0, fixed_abs, tag = 'sflag constant byte address 0x0 - dummy sync flag']
  %s0 = inlined_call_operand.vmem [shape: s32[8], index: 0, kind: input, shape index: {}]
  %s1 = inlined_call_operand.vmem [shape: f32[8], index: 1, kind: input, shape index: {}]
  %s2 = inlined_call_operand.vmem [shape: s8[32,32,128], index: 2, kind: input, shape index: {}]
  %s3 = inlined_call_operand.hbm [shape: f32[32,32,128], index: 3, kind: output, shape index: {0}]
  %s4 = inlined_call_operand.hbm [shape: s8[3,32,32,128], index: 4, kind: output, shape index: {1}]
  %5 = xla_tuple %s3, %s4
  %s6 = sld [smem:[#allocation0]]
  $region61: #{vessel_intensity_synth1_forward.1} parent=0
    _
  %s8 = ssub.s32 1, %s6
  %s9 = scalar_select 0, %s8, %s6
  $region1: #{vessel_intensity_synth1_forward.1} parent=0
    #allocation2 [shape = 'u8[512]{0}', space=smem, size = 0x200, scoped, tag = 'input window, operand 0, single buffered']
    #allocation3 [shape = 's32[2]{0}', space=sflag, size = 0x8, scoped, tag = 'scoped memory for vessel_intensity_synth1_forward.1']
    #allocation4 [shape = 's32[2]{0}', space=sflag, size = 0x8, scoped, tag = 'scoped memory for vessel_intensity_synth1_forward.1']
    #allocation5 [shape = 'u8[512]{0}', space=smem, size = 0x200, scoped, tag = 'input window, operand 1, single buffered']
    #allocation6 [shape = 's32[1]{0}', space=sflag, size = 0x4, scoped, tag = 'scoped memory for vessel_intensity_synth1_forward.1']
    #allocation7 [shape = 'u8[262144]{0}', space=vmem, size = 0x40000, scoped, tag = 'output window, operand 0']
    #allocation8 [shape = 'u8[196608]{0}', space=vmem, size = 0x30000, scoped, tag = 'output window, operand 1']
    #allocation9 [shape = 's32[2]{0}', space=sflag, size = 0x8, scoped, tag = 'scoped memory for vessel_intensity_synth1_forward.1']
    %10 = vsyncpa [#allocation4], 0
    %11 = vsyncpa [#allocation6], 0
    %12 = vsyncpa [#allocation3], 0
    %s13 = scalar_lea.sflag [#allocation3], 1
    %14 = vsyncpa %s13, 0
    %15 = vsyncpa [#allocation9], 0
    %s16 = scalar_lea.sflag [#allocation9], 1
    %17 = vsyncpa %s16, 0
    loop: start=0, step=1, limit=6
    $region2: #{vessel_intensity_synth1_forward.1} parent=1 // loop_pre_header
      _
    $region3: #{vessel_intensity_synth1_forward.1} parent=1 // loop_header
      %s19 = sphi 0, %s23
      %p20 = scmp.ge.s32.totalorder %s19, 6
      %s27 = sphi 0, %s27
      %s29 = sphi 0, %s27
      %s30 = sphi 0, %s29
      %s44 = sphi 0, %s30
      %s48 = sphi 0, %s48
      %s50 = sphi 0, %s48
      %s51 = sphi 0, %s50
      %s65 = sphi 0, %s51
      %s71 = sphi 0, %s73
      %s74 = sphi 0, %s71
      %s75 = sphi 0, %s74
      %s91 = sphi 0, %s75
      %s97 = sphi 0, %s99
      %s100 = sphi 0, %s97
      %s101 = sphi 0, %s100
      %s117 = sphi 0, %s101
      %s123 = sphi 0, %s125
      %s126 = sphi 0, %s123
      %s127 = sphi 0, %s126
      %s143 = sphi 0, %s127
    $region4: #{vessel_intensity_synth1_forward.1} parent=1 // loop_header_branch
      %22 = sbr.rel (%p20) target = $region8
    $region5: #{vessel_intensity_synth1_forward.1} parent=1 // loop_body
      %s24 = ssub.s32 %s19, 1
      %s25 = ssub.s32 %s19, 2
      %s26 = sadd.s32 %s19, 1
      %s28 = sadd.s32 %s27, 1
      %p31 = scmp.eq.s32.totalorder %s19, 3
      %p32 = scmp.ne.s32.totalorder %s27, %s29
      %p33 = scmp.eq.s32.totalorder %s19, 0
      %p34 = por %p32, %p33
      %p35 = scmp.ne.s32.totalorder %s27, %s29
      %p36 = scmp.eq.s32.totalorder %s24, 3
      %p37 = por %p35, %p36
      %p38 = scmp.ne.s32.totalorder %s29, %s30
      %p39 = scmp.eq.s32.totalorder %s24, 0
      %p40 = por %p38, %p39
      %p41 = scmp.ne.s32.totalorder %s29, %s30
      %p42 = scmp.eq.s32.totalorder %s25, 3
      %p43 = por %p41, %p42
      %p45 = scmp.ne.s32.totalorder %s30, %s44
      %p46 = scmp.eq.s32.totalorder %s25, 0
      %p47 = por %p45, %p46
      %s49 = sadd.s32 %s48, 1
      %p52 = scmp.eq.s32.totalorder %s19, 3
      %p53 = scmp.ne.s32.totalorder %s48, %s50
      %p54 = scmp.eq.s32.totalorder %s19, 0
      %p55 = por %p53, %p54
      %p56 = scmp.ne.s32.totalorder %s48, %s50
      %p57 = scmp.eq.s32.totalorder %s24, 3
      %p58 = por %p56, %p57
      %p59 = scmp.ne.s32.totalorder %s50, %s51
      %p60 = scmp.eq.s32.totalorder %s24, 0
      %p61 = por %p59, %p60
      %p62 = scmp.ne.s32.totalorder %s50, %s51
      %p63 = scmp.eq.s32.totalorder %s25, 3
      %p64 = por %p62, %p63
      %p66 = scmp.ne.s32.totalorder %s51, %s65
      %p67 = scmp.eq.s32.totalorder %s25, 0
      %p68 = por %p66, %p67
      %s69 = ssub.s32 %s19, %s26
      %p70 = scmp.eq.s32.totalorder %s69, 0
      %s72 = sadd.s32 %s71, 1
      %s73 = scalar_select %p70, %s71, %s72
      %p76 = pneg %p70
      %p77 = scmp.eq.s32.totalorder %s19, 3
      %p78 = por %p76, %p77
      %p79 = scmp.ne.s32.totalorder %s71, %s74
      %p80 = scmp.eq.s32.totalorder %s19, 0
      %p81 = por %p79, %p80
      %p82 = scmp.ne.s32.totalorder %s71, %s74
      %p83 = scmp.eq.s32.totalorder %s24, 3
      %p84 = por %p82, %p83
      %p85 = scmp.ne.s32.totalorder %s74, %s75
      %p86 = scmp.eq.s32.totalorder %s24, 0
      %p87 = por %p85, %p86
      %p88 = scmp.ne.s32.totalorder %s74, %s75
      %p89 = scmp.eq.s32.totalorder %s25, 3
      %p90 = por %p88, %p89
      %p92 = scmp.ne.s32.totalorder %s75, %s91
      %p93 = scmp.eq.s32.totalorder %s25, 0
      %p94 = por %p92, %p93
      %s95 = ssub.s32 %s19, %s26
      %p96 = scmp.eq.s32.totalorder %s95, 0
      %s98 = sadd.s32 %s97, 1
      %s99 = scalar_select %p96, %s97, %s98
      %p102 = pneg %p96
      %p103 = scmp.eq.s32.totalorder %s19, 3
      %p104 = por %p102, %p103
      %p105 = scmp.ne.s32.totalorder %s97, %s100
      %p106 = scmp.eq.s32.totalorder %s19, 0
      %p107 = por %p105, %p106
      %p108 = scmp.ne.s32.totalorder %s97, %s100
      %p109 = scmp.eq.s32.totalorder %s24, 3
      %p110 = por %p108, %p109
      %p111 = scmp.ne.s32.totalorder %s100, %s101
      %p112 = scmp.eq.s32.totalorder %s24, 0
      %p113 = por %p111, %p112
      %p114 = scmp.ne.s32.totalorder %s100, %s101
      %p115 = scmp.eq.s32.totalorder %s25, 3
      %p116 = por %p114, %p115
      %p118 = scmp.ne.s32.totalorder %s101, %s117
      %p119 = scmp.eq.s32.totalorder %s25, 0
      %p120 = por %p118, %p119
      %s121 = ssub.s32 %s19, %s26
      %p122 = scmp.eq.s32.totalorder %s121, 0
      %s124 = sadd.s32 %s123, 1
      %s125 = scalar_select %p122, %s123, %s124
      %p128 = pneg %p122
      %p129 = scmp.eq.s32.totalorder %s19, 3
      %p130 = por %p128, %p129
      %p131 = scmp.ne.s32.totalorder %s123, %s126
      %p132 = scmp.eq.s32.totalorder %s19, 0
      %p133 = por %p131, %p132
      %p134 = scmp.ne.s32.totalorder %s123, %s126
      %p135 = scmp.eq.s32.totalorder %s24, 3
      %p136 = por %p134, %p135
      %p137 = scmp.ne.s32.totalorder %s126, %s127
      %p138 = scmp.eq.s32.totalorder %s24, 0
      %p139 = por %p137, %p138
      %p140 = scmp.ne.s32.totalorder %s126, %s127
      %p141 = scmp.eq.s32.totalorder %s25, 3
      %p142 = por %p140, %p141
      %p144 = scmp.ne.s32.totalorder %s127, %s143
      %p145 = scmp.eq.s32.totalorder %s25, 0
      %p146 = por %p144, %p145
      %p147 = scmp.le.s32.totalorder 1, %s19
      %p148 = scmp.lt.s32.totalorder %s19, 5
      %p149 = pnand %p147, %p148
      %p150 = pneg %p149
      // Predicated region
      $region9: #{vessel_intensity_synth1_forward.1} parent=5 // pred_check
        _
      $region10: #{vessel_intensity_synth1_forward.1} parent=5 // pred_check_branch
        %152 = sbr.rel (%p149) target = $region12
      $region11: #{vessel_intensity_synth1_forward.1} parent=5 // pred_region
        %s153 = ssub.s32 %s19, 1
        // Predicated region
        $region13: #{vessel_intensity_synth1_forward.1} parent=11 // pred_check
          %p154 = pneg %p40
        $region14: #{vessel_intensity_synth1_forward.1} parent=11 // pred_check_branch
          %156 = sbr.rel (%p154) target = $region16
        $region15: #{vessel_intensity_synth1_forward.1} parent=11 // pred_region
          %158 = vsyncadd [#allocation4], 0
          %s160 = sshll.u32 %s0, 4
          %s161 = int_to_ptr.vmem [resolvable:$true] %s160
          %163 = dma.vmem_to_smem %s161, 16, [#allocation2], [#allocation4]
        $region16: #{vessel_intensity_synth1_forward.1} parent=11 // pred_fallthru
          _
        // Predicated region
        $region17: #{vessel_intensity_synth1_forward.1} parent=11 // pred_check
          %p164 = pneg %p61
        $region18: #{vessel_intensity_synth1_forward.1} parent=11 // pred_check_branch
          %166 = sbr.rel (%p164) target = $region20
        $region19: #{vessel_intensity_synth1_forward.1} parent=11 // pred_region
          %168 = vsyncadd [#allocation6], 0
          %s170 = sshll.u32 %s1, 4
          %s171 = int_to_ptr.vmem [resolvable:$true] %s170
          %173 = dma.vmem_to_smem %s171, 16, [#allocation5], [#allocation6]
        $region20: #{vessel_intensity_synth1_forward.1} parent=11 // pred_fallthru
          _
      $region12: #{vessel_intensity_synth1_forward.1} parent=5 // pred_fallthru
        _
      %p174 = scmp.lt.s32.totalorder %s19, 4
      // Predicated region
      $region21: #{vessel_intensity_synth1_forward.1} parent=5 // pred_check
        %p175 = pneg %p174
      $region22: #{vessel_intensity_synth1_forward.1} parent=5 // pred_check_branch
        %177 = sbr.rel (%p175) target = $region24
      $region23: #{vessel_intensity_synth1_forward.1} parent=5 // pred_region
        // Predicated region
        $region25: #{vessel_intensity_synth1_forward.1} parent=23 // pred_check
          %p178 = pneg %p81
        $region26: #{vessel_intensity_synth1_forward.1} parent=23 // pred_check_branch
          %180 = sbr.rel (%p178) target = $region28
        $region27: #{vessel_intensity_synth1_forward.1} parent=23 // pred_region
          %s181 = smul.u32 8, %s19
          %p182 = scmp.lt.s32.totalorder %s181, 31
          %s183 = scalar_select %p182, %s181, 31
          %s184 = smul.addr %s183, 8
          %s185 = scalar_lea.vmem %s2, %s184
          %s186 = smul.u32 8, %s19
        $region28: #{vessel_intensity_synth1_forward.1} parent=23 // pred_fallthru
          _
      $region24: #{vessel_intensity_synth1_forward.1} parent=5 // pred_fallthru
        _
      %p187 = scmp.le.s32.totalorder 1, %s19
      %p188 = scmp.lt.s32.totalorder %s19, 5
      %p189 = pnand %p187, %p188
      %p190 = pneg %p189
      // Predicated region
      $region29: #{vessel_intensity_synth1_forward.1} parent=5 // pred_check
        _
      $region30: #{vessel_intensity_synth1_forward.1} parent=5 // pred_check_branch
        %192 = sbr.rel (%p189) target = $region32
      $region31: #{vessel_intensity_synth1_forward.1} parent=5 // pred_region
        %s193 = ssub.s32 %s19, 1
        // Predicated region
        $region33: #{vessel_intensity_synth1_forward.1} parent=31 // pred_check
          %p194 = pneg %p40
        $region34: #{vessel_intensity_synth1_forward.1} parent=31 // pred_check_branch
          %196 = sbr.rel (%p194) target = $region36
        $region35: #{vessel_intensity_synth1_forward.1} parent=31 // pred_region
          %198 = dma.done [#allocation4], 16
        $region36: #{vessel_intensity_synth1_forward.1} parent=31 // pred_fallthru
          _
        // Predicated region
        $region37: #{vessel_intensity_synth1_forward.1} parent=31 // pred_check
          %p199 = pneg %p61
        $region38: #{vessel_intensity_synth1_forward.1} parent=31 // pred_check_branch
          %201 = sbr.rel (%p199) target = $region40
        $region39: #{vessel_intensity_synth1_forward.1} parent=31 // pred_region
          %203 = dma.done [#allocation6], 16
        $region40: #{vessel_intensity_synth1_forward.1} parent=31 // pred_fallthru
          _
        %204 = sfence
        %p205 = pneg %p40
        %p206 = pneg %p37
        %p207 = pneg %p61
        %p208 = pneg %p58
        %s209 = smul.u32 8, %s24
        %p210 = scmp.lt.s32.totalorder %s209, 31
        %s211 = scalar_select %p210, %s209, 31
        %s212 = smul.addr %s211, 8
        %s213 = scalar_lea.vmem %s2, %s212
        %p214 = pneg %p87
        %p215 = pneg %p84
        %p216 = pneg %p113
        %p217 = pneg %p110
        %s218 = sand.u32 %s100, 1
        %s219 = scalar_lea.sflag [#allocation3], %s218
        %s220 = sand.u32 %s100, 1
        %s221 = smul.addr %s220, 256
        %s222 = scalar_lea.vmem [#allocation7], %s221
        %p223 = pneg %p139
        %p224 = pneg %p136
        %s225 = sand.u32 %s126, 1
        %s226 = scalar_lea.sflag [#allocation9], %s225
        %s227 = sand.u32 %s126, 1
        %s228 = smul.addr %s227, 192
        %s229 = scalar_lea.vmem [#allocation8], %s228
        %s230 = smul.u32 8, %s24
        %p231 = scmp.lt.s32.totalorder %s230, 31
        %s232 = scalar_select %p231, %s230, 31
        %s233 = smul.addr %s232, 8
        %s234 = scalar_lea.vmem %s2, %s233
        %s235 = smul.u32 8, %s24
        %s236 = smul.u32 8, %s24
        %s237 = smul.u32 8, %s24
        %v240 = vld [vmem:[%s234] sm:$0xff]
        %v241 = vld [vmem:[%s234 + $0x8] sm:$0xff]
        %v242 = vld [vmem:[%s234 + $0x10] sm:$0xff]
        %v243 = vld [vmem:[%s234 + $0x18] sm:$0xff]
        %v244 = vld [vmem:[%s234 + $0x20] sm:$0xff]
        %v245 = vld [vmem:[%s234 + $0x28] sm:$0xff]
        %v246 = vld [vmem:[%s234 + $0x30] sm:$0xff]
        %v247 = vld [vmem:[%s234 + $0x38] sm:$0xff]
        %v248 = vunpack.c.0.s8 %v240
        %v249 = vunpack.c.1.s8 %v240
        %v250 = vunpack.c.2.s8 %v240
        %v251 = vunpack.c.3.s8 %v240
        %v252 = vunpack.c.0.s8 %v241
        %v253 = vunpack.c.1.s8 %v241
        %v254 = vunpack.c.2.s8 %v241
        %v255 = vunpack.c.3.s8 %v241
        %v256 = vunpack.c.0.s8 %v242
        %v257 = vunpack.c.1.s8 %v242
        %v258 = vunpack.c.2.s8 %v242
        %v259 = vunpack.c.3.s8 %v242
        %v260 = vunpack.c.0.s8 %v243
        %v261 = vunpack.c.1.s8 %v243
        %v262 = vunpack.c.2.s8 %v243
        %v263 = vunpack.c.3.s8 %v243
        %v264 = vunpack.c.0.s8 %v244
        %v265 = vunpack.c.1.s8 %v244
        %v266 = vunpack.c.2.s8 %v244
        %v267 = vunpack.c.3.s8 %v244
        %v268 = vunpack.c.0.s8 %v245
        %v269 = vunpack.c.1.s8 %v245
        %v270 = vunpack.c.2.s8 %v245
        %v271 = vunpack.c.3.s8 %v245
        %v272 = vunpack.c.0.s8 %v246
        %v273 = vunpack.c.1.s8 %v246
        %v274 = vunpack.c.2.s8 %v246
        %v275 = vunpack.c.3.s8 %v246
        %v276 = vunpack.c.0.s8 %v247
        %v277 = vunpack.c.1.s8 %v247
        %v278 = vunpack.c.2.s8 %v247
        %v279 = vunpack.c.3.s8 %v247
        %s280 = sld [smem:[#allocation2]]
        %v281 = vstv %s280
        %vm282 = vcmp.eq.s32.totalorder %v248, %v281
        %vm283 = vcmp.eq.s32.totalorder %v249, %v281
        %vm284 = vcmp.eq.s32.totalorder %v250, %v281
        %vm285 = vcmp.eq.s32.totalorder %v251, %v281
        %vm286 = vcmp.eq.s32.totalorder %v252, %v281
        %vm287 = vcmp.eq.s32.totalorder %v253, %v281
        %vm288 = vcmp.eq.s32.totalorder %v254, %v281
        %vm289 = vcmp.eq.s32.totalorder %v255, %v281
        %vm290 = vcmp.eq.s32.totalorder %v256, %v281
        %vm291 = vcmp.eq.s32.totalorder %v257, %v281
        %vm292 = vcmp.eq.s32.totalorder %v258, %v281
        %vm293 = vcmp.eq.s32.totalorder %v259, %v281
        %vm294 = vcmp.eq.s32.totalorder %v260, %v281
        %vm295 = vcmp.eq.s32.totalorder %v261, %v281
        %vm296 = vcmp.eq.s32.totalorder %v262, %v281
        %vm297 = vcmp.eq.s32.totalorder %v263, %v281
        %vm298 = vcmp.eq.s32.totalorder %v264, %v281
        %vm299 = vcmp.eq.s32.totalorder %v265, %v281
        %vm300 = vcmp.eq.s32.totalorder %v266, %v281
        %vm301 = vcmp.eq.s32.totalorder %v267, %v281
        %vm302 = vcmp.eq.s32.totalorder %v268, %v281
        %vm303 = vcmp.eq.s32.totalorder %v269, %v281
        %vm304 = vcmp.eq.s32.totalorder %v270, %v281
        %vm305 = vcmp.eq.s32.totalorder %v271, %v281
        %vm306 = vcmp.eq.s32.totalorder %v272, %v281
        %vm307 = vcmp.eq.s32.totalorder %v273, %v281
        %vm308 = vcmp.eq.s32.totalorder %v274, %v281
        %vm309 = vcmp.eq.s32.totalorder %v275, %v281
        %vm310 = vcmp.eq.s32.totalorder %v276, %v281
        %vm311 = vcmp.eq.s32.totalorder %v277, %v281
        %vm312 = vcmp.eq.s32.totalorder %v278, %v281
        %vm313 = vcmp.eq.s32.totalorder %v279, %v281
        %s314 = sld [smem:[#allocation5]]
        %v315 = vstv %s314
        %v316 = vsel %vm282, %v315, 1.0
        %v317 = vsel %vm283, %v315, 1.0
        %v318 = vsel %vm284, %v315, 1.0
        %v319 = vsel %vm285, %v315, 1.0
        %v320 = vsel %vm286, %v315, 1.0
        %v321 = vsel %vm287, %v315, 1.0
        %v322 = vsel %vm288, %v315, 1.0
        %v323 = vsel %vm289, %v315, 1.0
        %v324 = vsel %vm290, %v315, 1.0
        %v325 = vsel %vm291, %v315, 1.0
        %v326 = vsel %vm292, %v315, 1.0
        %v327 = vsel %vm293, %v315, 1.0
        %v328 = vsel %vm294, %v315, 1.0
        %v329 = vsel %vm295, %v315, 1.0
        %v330 = vsel %vm296, %v315, 1.0
        %v331 = vsel %vm297, %v315, 1.0
        %v332 = vsel %vm298, %v315, 1.0
        %v333 = vsel %vm299, %v315, 1.0
        %v334 = vsel %vm300, %v315, 1.0
        %v335 = vsel %vm301, %v315, 1.0
        %v336 = vsel %vm302, %v315, 1.0
        %v337 = vsel %vm303, %v315, 1.0
        %v338 = vsel %vm304, %v315, 1.0
        %v339 = vsel %vm305, %v315, 1.0
        %v340 = vsel %vm306, %v315, 1.0
        %v341 = vsel %vm307, %v315, 1.0
        %v342 = vsel %vm308, %v315, 1.0
        %v343 = vsel %vm309, %v315, 1.0
        %v344 = vsel %vm310, %v315, 1.0
        %v345 = vsel %vm311, %v315, 1.0
        %v346 = vsel %vm312, %v315, 1.0
        %v347 = vsel %vm313, %v315, 1.0
        %s348 = sld [smem:[#allocation2 + $0x1]]
        %v349 = vstv %s348
        %vm350 = vcmp.eq.s32.totalorder %v248, %v349
        %vm351 = vcmp.eq.s32.totalorder %v249, %v349
        %vm352 = vcmp.eq.s32.totalorder %v250, %v349
        %vm353 = vcmp.eq.s32.totalorder %v251, %v349
        %vm354 = vcmp.eq.s32.totalorder %v252, %v349
        %vm355 = vcmp.eq.s32.totalorder %v253, %v349
        %vm356 = vcmp.eq.s32.totalorder %v254, %v349
        %vm357 = vcmp.eq.s32.totalorder %v255, %v349
        %vm358 = vcmp.eq.s32.totalorder %v256, %v349
        %vm359 = vcmp.eq.s32.totalorder %v257, %v349
        %vm360 = vcmp.eq.s32.totalorder %v258, %v349
        %vm361 = vcmp.eq.s32.totalorder %v259, %v349
        %vm362 = vcmp.eq.s32.totalorder %v260, %v349
        %vm363 = vcmp.eq.s32.totalorder %v261, %v349
        %vm364 = vcmp.eq.s32.totalorder %v262, %v349
        %vm365 = vcmp.eq.s32.totalorder %v263, %v349
        %vm366 = vcmp.eq.s32.totalorder %v264, %v349
        %vm367 = vcmp.eq.s32.totalorder %v265, %v349
        %vm368 = vcmp.eq.s32.totalorder %v266, %v349
        %vm369 = vcmp.eq.s32.totalorder %v267, %v349
        %vm370 = vcmp.eq.s32.totalorder %v268, %v349
        %vm371 = vcmp.eq.s32.totalorder %v269, %v349
        %vm372 = vcmp.eq.s32.totalorder %v270, %v349
        %vm373 = vcmp.eq.s32.totalorder %v271, %v349
        %vm374 = vcmp.eq.s32.totalorder %v272, %v349
        %vm375 = vcmp.eq.s32.totalorder %v273, %v349
        %vm376 = vcmp.eq.s32.totalorder %v274, %v349
        %vm377 = vcmp.eq.s32.totalorder %v275, %v349
        %vm378 = vcmp.eq.s32.totalorder %v276, %v349
        %vm379 = vcmp.eq.s32.totalorder %v277, %v349
        %vm380 = vcmp.eq.s32.totalorder %v278, %v349
        %vm381 = vcmp.eq.s32.totalorder %v279, %v349
        %s382 = sld [smem:[#allocation5 + $0x1]]
        %v383 = vstv %s382
        %v384 = vsel %vm350, %v383, %v316
        %v385 = vsel %vm351, %v383, %v317
        %v386 = vsel %vm352, %v383, %v318
        %v387 = vsel %vm353, %v383, %v319
        %v388 = vsel %vm354, %v383, %v320
        %v389 = vsel %vm355, %v383, %v321
        %v390 = vsel %vm356, %v383, %v322
        %v391 = vsel %vm357, %v383, %v323
        %v392 = vsel %vm358, %v383, %v324
        %v393 = vsel %vm359, %v383, %v325
        %v394 = vsel %vm360, %v383, %v326
        %v395 = vsel %vm361, %v383, %v327
        %v396 = vsel %vm362, %v383, %v328
        %v397 = vsel %vm363, %v383, %v329
        %v398 = vsel %vm364, %v383, %v330
        %v399 = vsel %vm365, %v383, %v331
        %v400 = vsel %vm366, %v383, %v332
        %v401 = vsel %vm367, %v383, %v333
        %v402 = vsel %vm368, %v383, %v334
        %v403 = vsel %vm369, %v383, %v335
        %v404 = vsel %vm370, %v383, %v336
        %v405 = vsel %vm371, %v383, %v337
        %v406 = vsel %vm372, %v383, %v338
        %v407 = vsel %vm373, %v383, %v339
        %v408 = vsel %vm374, %v383, %v340
        %v409 = vsel %vm375, %v383, %v341
        %v410 = vsel %vm376, %v383, %v342
        %v411 = vsel %vm377, %v383, %v343
        %v412 = vsel %vm378, %v383, %v344
        %v413 = vsel %vm379, %v383, %v345
        %v414 = vsel %vm380, %v383, %v346
        %v415 = vsel %vm381, %v383, %v347
        %s416 = sld [smem:[#allocation2 + $0x2]]
        %v417 = vstv %s416
        %vm418 = vcmp.eq.s32.totalorder %v248, %v417
        %vm419 = vcmp.eq.s32.totalorder %v249, %v417
        %vm420 = vcmp.eq.s32.totalorder %v250, %v417
        %vm421 = vcmp.eq.s32.totalorder %v251, %v417
        %vm422 = vcmp.eq.s32.totalorder %v252, %v417
        %vm423 = vcmp.eq.s32.totalorder %v253, %v417
        %vm424 = vcmp.eq.s32.totalorder %v254, %v417
        %vm425 = vcmp.eq.s32.totalorder %v255, %v417
        %vm426 = vcmp.eq.s32.totalorder %v256, %v417
        %vm427 = vcmp.eq.s32.totalorder %v257, %v417
        %vm428 = vcmp.eq.s32.totalorder %v258, %v417
        %vm429 = vcmp.eq.s32.totalorder %v259, %v417
        %vm430 = vcmp.eq.s32.totalorder %v260, %v417
        %vm431 = vcmp.eq.s32.totalorder %v261, %v417
        %vm432 = vcmp.eq.s32.totalorder %v262, %v417
        %vm433 = vcmp.eq.s32.totalorder %v263, %v417
        %vm434 = vcmp.eq.s32.totalorder %v264, %v417
        %vm435 = vcmp.eq.s32.totalorder %v265, %v417
        %vm436 = vcmp.eq.s32.totalorder %v266, %v417
        %vm437 = vcmp.eq.s32.totalorder %v267, %v417
        %vm438 = vcmp.eq.s32.totalorder %v268, %v417
        %vm439 = vcmp.eq.s32.totalorder %v269, %v417
        %vm440 = vcmp.eq.s32.totalorder %v270, %v417
        %vm441 = vcmp.eq.s32.totalorder %v271, %v417
        %vm442 = vcmp.eq.s32.totalorder %v272, %v417
        %vm443 = vcmp.eq.s32.totalorder %v273, %v417
        %vm444 = vcmp.eq.s32.totalorder %v274, %v417
        %vm445 = vcmp.eq.s32.totalorder %v275, %v417
        %vm446 = vcmp.eq.s32.totalorder %v276, %v417
        %vm447 = vcmp.eq.s32.totalorder %v277, %v417
        %vm448 = vcmp.eq.s32.totalorder %v278, %v417
        %vm449 = vcmp.eq.s32.totalorder %v279, %v417
        %s450 = sld [smem:[#allocation5 + $0x2]]
        %v451 = vstv %s450
        %v452 = vsel %vm418, %v451, %v384
        %v453 = vsel %vm419, %v451, %v385
        %v454 = vsel %vm420, %v451, %v386
        %v455 = vsel %vm421, %v451, %v387
        %v456 = vsel %vm422, %v451, %v388
        %v457 = vsel %vm423, %v451, %v389
        %v458 = vsel %vm424, %v451, %v390
        %v459 = vsel %vm425, %v451, %v391
        %v460 = vsel %vm426, %v451, %v392
        %v461 = vsel %vm427, %v451, %v393
        %v462 = vsel %vm428, %v451, %v394
        %v463 = vsel %vm429, %v451, %v395
        %v464 = vsel %vm430, %v451, %v396
        %v465 = vsel %vm431, %v451, %v397
        %v466 = vsel %vm432, %v451, %v398
        %v467 = vsel %vm433, %v451, %v399
        %v468 = vsel %vm434, %v451, %v400
        %v469 = vsel %vm435, %v451, %v401
        %v470 = vsel %vm436, %v451, %v402
        %v471 = vsel %vm437, %v451, %v403
        %v472 = vsel %vm438, %v451, %v404
        %v473 = vsel %vm439, %v451, %v405
        %v474 = vsel %vm440, %v451, %v406
        %v475 = vsel %vm441, %v451, %v407
        %v476 = vsel %vm442, %v451, %v408
        %v477 = vsel %vm443, %v451, %v409
        %v478 = vsel %vm444, %v451, %v410
        %v479 = vsel %vm445, %v451, %v411
        %v480 = vsel %vm446, %v451, %v412
        %v481 = vsel %vm447, %v451, %v413
        %v482 = vsel %vm448, %v451, %v414
        %v483 = vsel %vm449, %v451, %v415
        %s484 = sld [smem:[#allocation2 + $0x3]]
        %v485 = vstv %s484
        %vm486 = vcmp.eq.s32.totalorder %v248, %v485
        %vm487 = vcmp.eq.s32.totalorder %v249, %v485
        %vm488 = vcmp.eq.s32.totalorder %v250, %v485
        %vm489 = vcmp.eq.s32.totalorder %v251, %v485
        %vm490 = vcmp.eq.s32.totalorder %v252, %v485
        %vm491 = vcmp.eq.s32.totalorder %v253, %v485
        %vm492 = vcmp.eq.s32.totalorder %v254, %v485
        %vm493 = vcmp.eq.s32.totalorder %v255, %v485
        %vm494 = vcmp.eq.s32.totalorder %v256, %v485
        %vm495 = vcmp.eq.s32.totalorder %v257, %v485
        %vm496 = vcmp.eq.s32.totalorder %v258, %v485
        %vm497 = vcmp.eq.s32.totalorder %v259, %v485
        %vm498 = vcmp.eq.s32.totalorder %v260, %v485
        %vm499 = vcmp.eq.s32.totalorder %v261, %v485
        %vm500 = vcmp.eq.s32.totalorder %v262, %v485
        %vm501 = vcmp.eq.s32.totalorder %v263, %v485
        %vm502 = vcmp.eq.s32.totalorder %v264, %v485
        %vm503 = vcmp.eq.s32.totalorder %v265, %v485
        %vm504 = vcmp.eq.s32.totalorder %v266, %v485
        %vm505 = vcmp.eq.s32.totalorder %v267, %v485
        %vm506 = vcmp.eq.s32.totalorder %v268, %v485
        %vm507 = vcmp.eq.s32.totalorder %v269, %v485
        %vm508 = vcmp.eq.s32.totalorder %v270, %v485
        %vm509 = vcmp.eq.s32.totalorder %v271, %v485
        %vm510 = vcmp.eq.s32.totalorder %v272, %v485
        %vm511 = vcmp.eq.s32.totalorder %v273, %v485
        %vm512 = vcmp.eq.s32.totalorder %v274, %v485
        %vm513 = vcmp.eq.s32.totalorder %v275, %v485
        %vm514 = vcmp.eq.s32.totalorder %v276, %v485
        %vm515 = vcmp.eq.s32.totalorder %v277, %v485
        %vm516 = vcmp.eq.s32.totalorder %v278, %v485
        %vm517 = vcmp.eq.s32.totalorder %v279, %v485
        %s518 = sld [smem:[#allocation5 + $0x3]]
        %v519 = vstv %s518
        %v520 = vsel %vm486, %v519, %v452
        %v521 = vsel %vm487, %v519, %v453
        %v522 = vsel %vm488, %v519, %v454
        %v523 = vsel %vm489, %v519, %v455
        %v524 = vsel %vm490, %v519, %v456
        %v525 = vsel %vm491, %v519, %v457
        %v526 = vsel %vm492, %v519, %v458
        %v527 = vsel %vm493, %v519, %v459
        %v528 = vsel %vm494, %v519, %v460
        %v529 = vsel %vm495, %v519, %v461
        %v530 = vsel %vm496, %v519, %v462
        %v531 = vsel %vm497, %v519, %v463
        %v532 = vsel %vm498, %v519, %v464
        %v533 = vsel %vm499, %v519, %v465
        %v534 = vsel %vm500, %v519, %v466
        %v535 = vsel %vm501, %v519, %v467
        %v536 = vsel %vm502, %v519, %v468
        %v537 = vsel %vm503, %v519, %v469
        %v538 = vsel %vm504, %v519, %v470
        %v539 = vsel %vm505, %v519, %v471
        %v540 = vsel %vm506, %v519, %v472
        %v541 = vsel %vm507, %v519, %v473
        %v542 = vsel %vm508, %v519, %v474
        %v543 = vsel %vm509, %v519, %v475
        %v544 = vsel %vm510, %v519, %v476
        %v545 = vsel %vm511, %v519, %v477
        %v546 = vsel %vm512, %v519, %v478
        %v547 = vsel %vm513, %v519, %v479
        %v548 = vsel %vm514, %v519, %v480
        %v549 = vsel %vm515, %v519, %v481
        %v550 = vsel %vm516, %v519, %v482
        %v551 = vsel %vm517, %v519, %v483
        %s552 = sld [smem:[#allocation2 + $0x4]]
        %v553 = vstv %s552
        %vm554 = vcmp.eq.s32.totalorder %v248, %v553
        %vm555 = vcmp.eq.s32.totalorder %v249, %v553
        %vm556 = vcmp.eq.s32.totalorder %v250, %v553
        %vm557 = vcmp.eq.s32.totalorder %v251, %v553
        %vm558 = vcmp.eq.s32.totalorder %v252, %v553
        %vm559 = vcmp.eq.s32.totalorder %v253, %v553
        %vm560 = vcmp.eq.s32.totalorder %v254, %v553
        %vm561 = vcmp.eq.s32.totalorder %v255, %v553
        %vm562 = vcmp.eq.s32.totalorder %v256, %v553
        %vm563 = vcmp.eq.s32.totalorder %v257, %v553
        %vm564 = vcmp.eq.s32.totalorder %v258, %v553
        %vm565 = vcmp.eq.s32.totalorder %v259, %v553
        %vm566 = vcmp.eq.s32.totalorder %v260, %v553
        %vm567 = vcmp.eq.s32.totalorder %v261, %v553
        %vm568 = vcmp.eq.s32.totalorder %v262, %v553
        %vm569 = vcmp.eq.s32.totalorder %v263, %v553
        %vm570 = vcmp.eq.s32.totalorder %v264, %v553
        %vm571 = vcmp.eq.s32.totalorder %v265, %v553
        %vm572 = vcmp.eq.s32.totalorder %v266, %v553
        %vm573 = vcmp.eq.s32.totalorder %v267, %v553
        %vm574 = vcmp.eq.s32.totalorder %v268, %v553
        %vm575 = vcmp.eq.s32.totalorder %v269, %v553
        %vm576 = vcmp.eq.s32.totalorder %v270, %v553
        %vm577 = vcmp.eq.s32.totalorder %v271, %v553
        %vm578 = vcmp.eq.s32.totalorder %v272, %v553
        %vm579 = vcmp.eq.s32.totalorder %v273, %v553
        %vm580 = vcmp.eq.s32.totalorder %v274, %v553
        %vm581 = vcmp.eq.s32.totalorder %v275, %v553
        %vm582 = vcmp.eq.s32.totalorder %v276, %v553
        %vm583 = vcmp.eq.s32.totalorder %v277, %v553
        %vm584 = vcmp.eq.s32.totalorder %v278, %v553
        %vm585 = vcmp.eq.s32.totalorder %v279, %v553
        %s586 = sld [smem:[#allocation5 + $0x4]]
        %v587 = vstv %s586
        %v588 = vsel %vm554, %v587, %v520
        %v589 = vsel %vm555, %v587, %v521
        %v590 = vsel %vm556, %v587, %v522
        %v591 = vsel %vm557, %v587, %v523
        %v592 = vsel %vm558, %v587, %v524
        %v593 = vsel %vm559, %v587, %v525
        %v594 = vsel %vm560, %v587, %v526
        %v595 = vsel %vm561, %v587, %v527
        %v596 = vsel %vm562, %v587, %v528
        %v597 = vsel %vm563, %v587, %v529
        %v598 = vsel %vm564, %v587, %v530
        %v599 = vsel %vm565, %v587, %v531
        %v600 = vsel %vm566, %v587, %v532
        %v601 = vsel %vm567, %v587, %v533
        %v602 = vsel %vm568, %v587, %v534
        %v603 = vsel %vm569, %v587, %v535
        %v604 = vsel %vm570, %v587, %v536
        %v605 = vsel %vm571, %v587, %v537
        %v606 = vsel %vm572, %v587, %v538
        %v607 = vsel %vm573, %v587, %v539
        %v608 = vsel %vm574, %v587, %v540
        %v609 = vsel %vm575, %v587, %v541
        %v610 = vsel %vm576, %v587, %v542
        %v611 = vsel %vm577, %v587, %v543
        %v612 = vsel %vm578, %v587, %v544
        %v613 = vsel %vm579, %v587, %v545
        %v614 = vsel %vm580, %v587, %v546
        %v615 = vsel %vm581, %v587, %v547
        %v616 = vsel %vm582, %v587, %v548
        %v617 = vsel %vm583, %v587, %v549
        %v618 = vsel %vm584, %v587, %v550
        %v619 = vsel %vm585, %v587, %v551
        %s620 = sld [smem:[#allocation2 + $0x5]]
        %v621 = vstv %s620
        %vm622 = vcmp.eq.s32.totalorder %v248, %v621
        %vm623 = vcmp.eq.s32.totalorder %v249, %v621
        %vm624 = vcmp.eq.s32.totalorder %v250, %v621
        %vm625 = vcmp.eq.s32.totalorder %v251, %v621
        %vm626 = vcmp.eq.s32.totalorder %v252, %v621
        %vm627 = vcmp.eq.s32.totalorder %v253, %v621
        %vm628 = vcmp.eq.s32.totalorder %v254, %v621
        %vm629 = vcmp.eq.s32.totalorder %v255, %v621
        %vm630 = vcmp.eq.s32.totalorder %v256, %v621
        %vm631 = vcmp.eq.s32.totalorder %v257, %v621
        %vm632 = vcmp.eq.s32.totalorder %v258, %v621
        %vm633 = vcmp.eq.s32.totalorder %v259, %v621
        %vm634 = vcmp.eq.s32.totalorder %v260, %v621
        %vm635 = vcmp.eq.s32.totalorder %v261, %v621
        %vm636 = vcmp.eq.s32.totalorder %v262, %v621
        %vm637 = vcmp.eq.s32.totalorder %v263, %v621
        %vm638 = vcmp.eq.s32.totalorder %v264, %v621
        %vm639 = vcmp.eq.s32.totalorder %v265, %v621
        %vm640 = vcmp.eq.s32.totalorder %v266, %v621
        %vm641 = vcmp.eq.s32.totalorder %v267, %v621
        %vm642 = vcmp.eq.s32.totalorder %v268, %v621
        %vm643 = vcmp.eq.s32.totalorder %v269, %v621
        %vm644 = vcmp.eq.s32.totalorder %v270, %v621
        %vm645 = vcmp.eq.s32.totalorder %v271, %v621
        %vm646 = vcmp.eq.s32.totalorder %v272, %v621
        %vm647 = vcmp.eq.s32.totalorder %v273, %v621
        %vm648 = vcmp.eq.s32.totalorder %v274, %v621
        %vm649 = vcmp.eq.s32.totalorder %v275, %v621
        %vm650 = vcmp.eq.s32.totalorder %v276, %v621
        %vm651 = vcmp.eq.s32.totalorder %v277, %v621
        %vm652 = vcmp.eq.s32.totalorder %v278, %v621
        %vm653 = vcmp.eq.s32.totalorder %v279, %v621
        %s654 = sld [smem:[#allocation5 + $0x5]]
        %v655 = vstv %s654
        %v656 = vsel %vm622, %v655, %v588
        %v657 = vsel %vm623, %v655, %v589
        %v658 = vsel %vm624, %v655, %v590
        %v659 = vsel %vm625, %v655, %v591
        %v660 = vsel %vm626, %v655, %v592
        %v661 = vsel %vm627, %v655, %v593
        %v662 = vsel %vm628, %v655, %v594
        %v663 = vsel %vm629, %v655, %v595
        %v664 = vsel %vm630, %v655, %v596
        %v665 = vsel %vm631, %v655, %v597
        %v666 = vsel %vm632, %v655, %v598
        %v667 = vsel %vm633, %v655, %v599
        %v668 = vsel %vm634, %v655, %v600
        %v669 = vsel %vm635, %v655, %v601
        %v670 = vsel %vm636, %v655, %v602
        %v671 = vsel %vm637, %v655, %v603
        %v672 = vsel %vm638, %v655, %v604
        %v673 = vsel %vm639, %v655, %v605
        %v674 = vsel %vm640, %v655, %v606
        %v675 = vsel %vm641, %v655, %v607
        %v676 = vsel %vm642, %v655, %v608
        %v677 = vsel %vm643, %v655, %v609
        %v678 = vsel %vm644, %v655, %v610
        %v679 = vsel %vm645, %v655, %v611
        %v680 = vsel %vm646, %v655, %v612
        %v681 = vsel %vm647, %v655, %v613
        %v682 = vsel %vm648, %v655, %v614
        %v683 = vsel %vm649, %v655, %v615
        %v684 = vsel %vm650, %v655, %v616
        %v685 = vsel %vm651, %v655, %v617
        %v686 = vsel %vm652, %v655, %v618
        %v687 = vsel %vm653, %v655, %v619
        %s688 = sld [smem:[#allocation2 + $0x6]]
        %v689 = vstv %s688
        %vm690 = vcmp.eq.s32.totalorder %v248, %v689
        %vm691 = vcmp.eq.s32.totalorder %v249, %v689
        %vm692 = vcmp.eq.s32.totalorder %v250, %v689
        %vm693 = vcmp.eq.s32.totalorder %v251, %v689
        %vm694 = vcmp.eq.s32.totalorder %v252, %v689
        %vm695 = vcmp.eq.s32.totalorder %v253, %v689
        %vm696 = vcmp.eq.s32.totalorder %v254, %v689
        %vm697 = vcmp.eq.s32.totalorder %v255, %v689
        %vm698 = vcmp.eq.s32.totalorder %v256, %v689
        %vm699 = vcmp.eq.s32.totalorder %v257, %v689
        %vm700 = vcmp.eq.s32.totalorder %v258, %v689
        %vm701 = vcmp.eq.s32.totalorder %v259, %v689
        %vm702 = vcmp.eq.s32.totalorder %v260, %v689
        %vm703 = vcmp.eq.s32.totalorder %v261, %v689
        %vm704 = vcmp.eq.s32.totalorder %v262, %v689
        %vm705 = vcmp.eq.s32.totalorder %v263, %v689
        %vm706 = vcmp.eq.s32.totalorder %v264, %v689
        %vm707 = vcmp.eq.s32.totalorder %v265, %v689
        %vm708 = vcmp.eq.s32.totalorder %v266, %v689
        %vm709 = vcmp.eq.s32.totalorder %v267, %v689
        %vm710 = vcmp.eq.s32.totalorder %v268, %v689
        %vm711 = vcmp.eq.s32.totalorder %v269, %v689
        %vm712 = vcmp.eq.s32.totalorder %v270, %v689
        %vm713 = vcmp.eq.s32.totalorder %v271, %v689
        %vm714 = vcmp.eq.s32.totalorder %v272, %v689
        %vm715 = vcmp.eq.s32.totalorder %v273, %v689
        %vm716 = vcmp.eq.s32.totalorder %v274, %v689
        %vm717 = vcmp.eq.s32.totalorder %v275, %v689
        %vm718 = vcmp.eq.s32.totalorder %v276, %v689
        %vm719 = vcmp.eq.s32.totalorder %v277, %v689
        %vm720 = vcmp.eq.s32.totalorder %v278, %v689
        %vm721 = vcmp.eq.s32.totalorder %v279, %v689
        %s722 = sld [smem:[#allocation5 + $0x6]]
        %v723 = vstv %s722
        %v724 = vsel %vm690, %v723, %v656
        %v725 = vsel %vm691, %v723, %v657
        %v726 = vsel %vm692, %v723, %v658
        %v727 = vsel %vm693, %v723, %v659
        %v728 = vsel %vm694, %v723, %v660
        %v729 = vsel %vm695, %v723, %v661
        %v730 = vsel %vm696, %v723, %v662
        %v731 = vsel %vm697, %v723, %v663
        %v732 = vsel %vm698, %v723, %v664
        %v733 = vsel %vm699, %v723, %v665
        %v734 = vsel %vm700, %v723, %v666
        %v735 = vsel %vm701, %v723, %v667
        %v736 = vsel %vm702, %v723, %v668
        %v737 = vsel %vm703, %v723, %v669
        %v738 = vsel %vm704, %v723, %v670
        %v739 = vsel %vm705, %v723, %v671
        %v740 = vsel %vm706, %v723, %v672
        %v741 = vsel %vm707, %v723, %v673
        %v742 = vsel %vm708, %v723, %v674
        %v743 = vsel %vm709, %v723, %v675
        %v744 = vsel %vm710, %v723, %v676
        %v745 = vsel %vm711, %v723, %v677
        %v746 = vsel %vm712, %v723, %v678
        %v747 = vsel %vm713, %v723, %v679
        %v748 = vsel %vm714, %v723, %v680
        %v749 = vsel %vm715, %v723, %v681
        %v750 = vsel %vm716, %v723, %v682
        %v751 = vsel %vm717, %v723, %v683
        %v752 = vsel %vm718, %v723, %v684
        %v753 = vsel %vm719, %v723, %v685
        %v754 = vsel %vm720, %v723, %v686
        %v755 = vsel %vm721, %v723, %v687
        %s756 = sld [smem:[#allocation2 + $0x7]]
        %v757 = vstv %s756
        %vm758 = vcmp.eq.s32.totalorder %v248, %v757
        %vm759 = vcmp.eq.s32.totalorder %v249, %v757
        %vm760 = vcmp.eq.s32.totalorder %v250, %v757
        %vm761 = vcmp.eq.s32.totalorder %v251, %v757
        %vm762 = vcmp.eq.s32.totalorder %v252, %v757
        %vm763 = vcmp.eq.s32.totalorder %v253, %v757
        %vm764 = vcmp.eq.s32.totalorder %v254, %v757
        %vm765 = vcmp.eq.s32.totalorder %v255, %v757
        %vm766 = vcmp.eq.s32.totalorder %v256, %v757
        %vm767 = vcmp.eq.s32.totalorder %v257, %v757
        %vm768 = vcmp.eq.s32.totalorder %v258, %v757
        %vm769 = vcmp.eq.s32.totalorder %v259, %v757
        %vm770 = vcmp.eq.s32.totalorder %v260, %v757
        %vm771 = vcmp.eq.s32.totalorder %v261, %v757
        %vm772 = vcmp.eq.s32.totalorder %v262, %v757
        %vm773 = vcmp.eq.s32.totalorder %v263, %v757
        %vm774 = vcmp.eq.s32.totalorder %v264, %v757
        %vm775 = vcmp.eq.s32.totalorder %v265, %v757
        %vm776 = vcmp.eq.s32.totalorder %v266, %v757
        %vm777 = vcmp.eq.s32.totalorder %v267, %v757
        %vm778 = vcmp.eq.s32.totalorder %v268, %v757
        %vm779 = vcmp.eq.s32.totalorder %v269, %v757
        %vm780 = vcmp.eq.s32.totalorder %v270, %v757
        %vm781 = vcmp.eq.s32.totalorder %v271, %v757
        %vm782 = vcmp.eq.s32.totalorder %v272, %v757
        %vm783 = vcmp.eq.s32.totalorder %v273, %v757
        %vm784 = vcmp.eq.s32.totalorder %v274, %v757
        %vm785 = vcmp.eq.s32.totalorder %v275, %v757
        %vm786 = vcmp.eq.s32.totalorder %v276, %v757
        %vm787 = vcmp.eq.s32.totalorder %v277, %v757
        %vm788 = vcmp.eq.s32.totalorder %v278, %v757
        %vm789 = vcmp.eq.s32.totalorder %v279, %v757
        %s790 = sld [smem:[#allocation5 + $0x7]]
        %v791 = vstv %s790
        %v792 = vsel %vm758, %v791, %v724
        %v793 = vsel %vm759, %v791, %v725
        %v794 = vsel %vm760, %v791, %v726
        %v795 = vsel %vm761, %v791, %v727
        %v796 = vsel %vm762, %v791, %v728
        %v797 = vsel %vm763, %v791, %v729
        %v798 = vsel %vm764, %v791, %v730
        %v799 = vsel %vm765, %v791, %v731
        %v800 = vsel %vm766, %v791, %v732
        %v801 = vsel %vm767, %v791, %v733
        %v802 = vsel %vm768, %v791, %v734
        %v803 = vsel %vm769, %v791, %v735
        %v804 = vsel %vm770, %v791, %v736
        %v805 = vsel %vm771, %v791, %v737
        %v806 = vsel %vm772, %v791, %v738
        %v807 = vsel %vm773, %v791, %v739
        %v808 = vsel %vm774, %v791, %v740
        %v809 = vsel %vm775, %v791, %v741
        %v810 = vsel %vm776, %v791, %v742
        %v811 = vsel %vm777, %v791, %v743
        %v812 = vsel %vm778, %v791, %v744
        %v813 = vsel %vm779, %v791, %v745
        %v814 = vsel %vm780, %v791, %v746
        %v815 = vsel %vm781, %v791, %v747
        %v816 = vsel %vm782, %v791, %v748
        %v817 = vsel %vm783, %v791, %v749
        %v818 = vsel %vm784, %v791, %v750
        %v819 = vsel %vm785, %v791, %v751
        %v820 = vsel %vm786, %v791, %v752
        %v821 = vsel %vm787, %v791, %v753
        %v822 = vsel %vm788, %v791, %v754
        %v823 = vsel %vm789, %v791, %v755
        %824 = vst [vmem:[%s222] sm:$0xff] %v792
        %825 = vst [vmem:[%s222 + $0x8] sm:$0xff] %v793
        %826 = vst [vmem:[%s222 + $0x10] sm:$0xff] %v794
        %827 = vst [vmem:[%s222 + $0x18] sm:$0xff] %v795
        %828 = vst [vmem:[%s222 + $0x20] sm:$0xff] %v796
        %829 = vst [vmem:[%s222 + $0x28] sm:$0xff] %v797
        %830 = vst [vmem:[%s222 + $0x30] sm:$0xff] %v798
        %831 = vst [vmem:[%s222 + $0x38] sm:$0xff] %v799
        %832 = vst [vmem:[%s222 + $0x40] sm:$0xff] %v800
        %833 = vst [vmem:[%s222 + $0x48] sm:$0xff] %v801
        %834 = vst [vmem:[%s222 + $0x50] sm:$0xff] %v802
        %835 = vst [vmem:[%s222 + $0x58] sm:$0xff] %v803
        %836 = vst [vmem:[%s222 + $0x60] sm:$0xff] %v804
        %837 = vst [vmem:[%s222 + $0x68] sm:$0xff] %v805
        %838 = vst [vmem:[%s222 + $0x70] sm:$0xff] %v806
        %839 = vst [vmem:[%s222 + $0x78] sm:$0xff] %v807
        %840 = vst [vmem:[%s222 + $0x80] sm:$0xff] %v808
        %841 = vst [vmem:[%s222 + $0x88] sm:$0xff] %v809
        %842 = vst [vmem:[%s222 + $0x90] sm:$0xff] %v810
        %843 = vst [vmem:[%s222 + $0x98] sm:$0xff] %v811
        %844 = vst [vmem:[%s222 + $0xa0] sm:$0xff] %v812
        %845 = vst [vmem:[%s222 + $0xa8] sm:$0xff] %v813
        %846 = vst [vmem:[%s222 + $0xb0] sm:$0xff] %v814
        %847 = vst [vmem:[%s222 + $0xb8] sm:$0xff] %v815
        %848 = vst [vmem:[%s222 + $0xc0] sm:$0xff] %v816
        %849 = vst [vmem:[%s222 + $0xc8] sm:$0xff] %v817
        %850 = vst [vmem:[%s222 + $0xd0] sm:$0xff] %v818
        %851 = vst [vmem:[%s222 + $0xd8] sm:$0xff] %v819
        %852 = vst [vmem:[%s222 + $0xe0] sm:$0xff] %v820
        %853 = vst [vmem:[%s222 + $0xe8] sm:$0xff] %v821
        %854 = vst [vmem:[%s222 + $0xf0] sm:$0xff] %v822
        %855 = vst [vmem:[%s222 + $0xf8] sm:$0xff] %v823
        %vm856 = vcmp.lt.f32.partialorder %v792, 0.5
        %vm857 = vcmp.lt.f32.partialorder %v793, 0.5
        %vm858 = vcmp.lt.f32.partialorder %v794, 0.5
        %vm859 = vcmp.lt.f32.partialorder %v795, 0.5
        %vm860 = vcmp.lt.f32.partialorder %v796, 0.5
        %vm861 = vcmp.lt.f32.partialorder %v797, 0.5
        %vm862 = vcmp.lt.f32.partialorder %v798, 0.5
        %vm863 = vcmp.lt.f32.partialorder %v799, 0.5
        %vm864 = vcmp.lt.f32.partialorder %v800, 0.5
        %vm865 = vcmp.lt.f32.partialorder %v801, 0.5
        %vm866 = vcmp.lt.f32.partialorder %v802, 0.5
        %vm867 = vcmp.lt.f32.partialorder %v803, 0.5
        %vm868 = vcmp.lt.f32.partialorder %v804, 0.5
        %vm869 = vcmp.lt.f32.partialorder %v805, 0.5
        %vm870 = vcmp.lt.f32.partialorder %v806, 0.5
        %vm871 = vcmp.lt.f32.partialorder %v807, 0.5
        %vm872 = vcmp.lt.f32.partialorder %v808, 0.5
        %vm873 = vcmp.lt.f32.partialorder %v809, 0.5
        %vm874 = vcmp.lt.f32.partialorder %v810, 0.5
        %vm875 = vcmp.lt.f32.partialorder %v811, 0.5
        %vm876 = vcmp.lt.f32.partialorder %v812, 0.5
        %vm877 = vcmp.lt.f32.partialorder %v813, 0.5
        %vm878 = vcmp.lt.f32.partialorder %v814, 0.5
        %vm879 = vcmp.lt.f32.partialorder %v815, 0.5
        %vm880 = vcmp.lt.f32.partialorder %v816, 0.5
        %vm881 = vcmp.lt.f32.partialorder %v817, 0.5
        %vm882 = vcmp.lt.f32.partialorder %v818, 0.5
        %vm883 = vcmp.lt.f32.partialorder %v819, 0.5
        %vm884 = vcmp.lt.f32.partialorder %v820, 0.5
        %vm885 = vcmp.lt.f32.partialorder %v821, 0.5
        %vm886 = vcmp.lt.f32.partialorder %v822, 0.5
        %vm887 = vcmp.lt.f32.partialorder %v823, 0.5
        %vm888 = vcmp.ge.f32.partialorder %v792, 1.5
        %vm889 = vcmp.ge.f32.partialorder %v793, 1.5
        %vm890 = vcmp.ge.f32.partialorder %v794, 1.5
        %vm891 = vcmp.ge.f32.partialorder %v795, 1.5
        %vm892 = vcmp.ge.f32.partialorder %v796, 1.5
        %vm893 = vcmp.ge.f32.partialorder %v797, 1.5
        %vm894 = vcmp.ge.f32.partialorder %v798, 1.5
        %vm895 = vcmp.ge.f32.partialorder %v799, 1.5
        %vm896 = vcmp.ge.f32.partialorder %v800, 1.5
        %vm897 = vcmp.ge.f32.partialorder %v801, 1.5
        %vm898 = vcmp.ge.f32.partialorder %v802, 1.5
        %vm899 = vcmp.ge.f32.partialorder %v803, 1.5
        %vm900 = vcmp.ge.f32.partialorder %v804, 1.5
        %vm901 = vcmp.ge.f32.partialorder %v805, 1.5
        %vm902 = vcmp.ge.f32.partialorder %v806, 1.5
        %vm903 = vcmp.ge.f32.partialorder %v807, 1.5
        %vm904 = vcmp.ge.f32.partialorder %v808, 1.5
        %vm905 = vcmp.ge.f32.partialorder %v809, 1.5
        %vm906 = vcmp.ge.f32.partialorder %v810, 1.5
        %vm907 = vcmp.ge.f32.partialorder %v811, 1.5
        %vm908 = vcmp.ge.f32.partialorder %v812, 1.5
        %vm909 = vcmp.ge.f32.partialorder %v813, 1.5
        %vm910 = vcmp.ge.f32.partialorder %v814, 1.5
        %vm911 = vcmp.ge.f32.partialorder %v815, 1.5
        %vm912 = vcmp.ge.f32.partialorder %v816, 1.5
        %vm913 = vcmp.ge.f32.partialorder %v817, 1.5
        %vm914 = vcmp.ge.f32.partialorder %v818, 1.5
        %vm915 = vcmp.ge.f32.partialorder %v819, 1.5
        %vm916 = vcmp.ge.f32.partialorder %v820, 1.5
        %vm917 = vcmp.ge.f32.partialorder %v821, 1.5
        %vm918 = vcmp.ge.f32.partialorder %v822, 1.5
        %vm919 = vcmp.ge.f32.partialorder %v823, 1.5
        %vm920 = vmor %vm856, %vm888
        %vm921 = vmor %vm857, %vm889
        %vm922 = vmor %vm858, %vm890
        %vm923 = vmor %vm859, %vm891
        %vm924 = vmor %vm860, %vm892
        %vm925 = vmor %vm861, %vm893
        %vm926 = vmor %vm862, %vm894
        %vm927 = vmor %vm863, %vm895
        %vm928 = vmor %vm864, %vm896
        %vm929 = vmor %vm865, %vm897
        %vm930 = vmor %vm866, %vm898
        %vm931 = vmor %vm867, %vm899
        %vm932 = vmor %vm868, %vm900
        %vm933 = vmor %vm869, %vm901
        %vm934 = vmor %vm870, %vm902
        %vm935 = vmor %vm871, %vm903
        %vm936 = vmor %vm872, %vm904
        %vm937 = vmor %vm873, %vm905
        %vm938 = vmor %vm874, %vm906
        %vm939 = vmor %vm875, %vm907
        %vm940 = vmor %vm876, %vm908
        %vm941 = vmor %vm877, %vm909
        %vm942 = vmor %vm878, %vm910
        %vm943 = vmor %vm879, %vm911
        %vm944 = vmor %vm880, %vm912
        %vm945 = vmor %vm881, %vm913
        %vm946 = vmor %vm882, %vm914
        %vm947 = vmor %vm883, %vm915
        %vm948 = vmor %vm884, %vm916
        %vm949 = vmor %vm885, %vm917
        %vm950 = vmor %vm886, %vm918
        %vm951 = vmor %vm887, %vm919
        %vm952 = vmxor %vm920, 1
        %vm953 = vmxor %vm921, 1
        %vm954 = vmxor %vm922, 1
        %vm955 = vmxor %vm923, 1
        %vm956 = vmxor %vm924, 1
        %vm957 = vmxor %vm925, 1
        %vm958 = vmxor %vm926, 1
        %vm959 = vmxor %vm927, 1
        %vm960 = vmxor %vm928, 1
        %vm961 = vmxor %vm929, 1
        %vm962 = vmxor %vm930, 1
        %vm963 = vmxor %vm931, 1
        %vm964 = vmxor %vm932, 1
        %vm965 = vmxor %vm933, 1
        %vm966 = vmxor %vm934, 1
        %vm967 = vmxor %vm935, 1
        %vm968 = vmxor %vm936, 1
        %vm969 = vmxor %vm937, 1
        %vm970 = vmxor %vm938, 1
        %vm971 = vmxor %vm939, 1
        %vm972 = vmxor %vm940, 1
        %vm973 = vmxor %vm941, 1
        %vm974 = vmxor %vm942, 1
        %vm975 = vmxor %vm943, 1
        %vm976 = vmxor %vm944, 1
        %vm977 = vmxor %vm945, 1
        %vm978 = vmxor %vm946, 1
        %vm979 = vmxor %vm947, 1
        %vm980 = vmxor %vm948, 1
        %vm981 = vmxor %vm949, 1
        %vm982 = vmxor %vm950, 1
        %vm983 = vmxor %vm951, 1
        %vm984 = vmpackc.low %vm953, %vm952
        %vm985 = vmpackc.low %vm955, %vm954
        %v986 = vsel %vm984, 16711935, 0
        %v987 = vsel %vm985, 16711935, 0
        %v988 = vpack.c.b8 %v987, %v986
        %vm989 = vnez %v988
        %vm990 = vmpackc.low %vm957, %vm956
        %vm991 = vmpackc.low %vm959, %vm958
        %v992 = vsel %vm990, 16711935, 0
        %v993 = vsel %vm991, 16711935, 0
        %v994 = vpack.c.b8 %v993, %v992
        %vm995 = vnez %v994
        %vm996 = vmpackc.low %vm961, %vm960
        %vm997 = vmpackc.low %vm963, %vm962
        %v998 = vsel %vm996, 16711935, 0
        %v999 = vsel %vm997, 16711935, 0
        %v1000 = vpack.c.b8 %v999, %v998
        %vm1001 = vnez %v1000
        %vm1002 = vmpackc.low %vm965, %vm964
        %vm1003 = vmpackc.low %vm967, %vm966
        %v1004 = vsel %vm1002, 16711935, 0
        %v1005 = vsel %vm1003, 16711935, 0
        %v1006 = vpack.c.b8 %v1005, %v1004
        %vm1007 = vnez %v1006
        %vm1008 = vmpackc.low %vm969, %vm968
        %vm1009 = vmpackc.low %vm971, %vm970
        %v1010 = vsel %vm1008, 16711935, 0
        %v1011 = vsel %vm1009, 16711935, 0
        %v1012 = vpack.c.b8 %v1011, %v1010
        %vm1013 = vnez %v1012
        %vm1014 = vmpackc.low %vm973, %vm972
        %vm1015 = vmpackc.low %vm975, %vm974
        %v1016 = vsel %vm1014, 16711935, 0
        %v1017 = vsel %vm1015, 16711935, 0
        %v1018 = vpack.c.b8 %v1017, %v1016
        %vm1019 = vnez %v1018
        %vm1020 = vmpackc.low %vm977, %vm976
        %vm1021 = vmpackc.low %vm979, %vm978
        %v1022 = vsel %vm1020, 16711935, 0
        %v1023 = vsel %vm1021, 16711935, 0
        %v1024 = vpack.c.b8 %v1023, %v1022
        %vm1025 = vnez %v1024
        %vm1026 = vmpackc.low %vm981, %vm980
        %vm1027 = vmpackc.low %vm983, %vm982
        %v1028 = vsel %vm1026, 16711935, 0
        %v1029 = vsel %vm1027, 16711935, 0
        %v1030 = vpack.c.b8 %v1029, %v1028
        %vm1031 = vnez %v1030
        %v1032 = vsel %vm989, 16843009, 0
        %v1033 = vsel %vm995, 16843009, 0
        %v1034 = vsel %vm1001, 16843009, 0
        %v1035 = vsel %vm1007, 16843009, 0
        %v1036 = vsel %vm1013, 16843009, 0
        %v1037 = vsel %vm1019, 16843009, 0
        %v1038 = vsel %vm1025, 16843009, 0
        %v1039 = vsel %vm1031, 16843009, 0
        %1040 = vst [vmem:[%s229] sm:$0xff] %v1032
        %1041 = vst [vmem:[%s229 + $0x8] sm:$0xff] %v1033
        %1042 = vst [vmem:[%s229 + $0x10] sm:$0xff] %v1034
        %1043 = vst [vmem:[%s229 + $0x18] sm:$0xff] %v1035
        %1044 = vst [vmem:[%s229 + $0x20] sm:$0xff] %v1036
        %1045 = vst [vmem:[%s229 + $0x28] sm:$0xff] %v1037
        %1046 = vst [vmem:[%s229 + $0x30] sm:$0xff] %v1038
        %1047 = vst [vmem:[%s229 + $0x38] sm:$0xff] %v1039
        %vm1048 = vmpackc.low %vm857, %vm856
        %vm1049 = vmpackc.low %vm859, %vm858
        %v1050 = vsel %vm1048, 16711935, 0
        %v1051 = vsel %vm1049, 16711935, 0
        %v1052 = vpack.c.b8 %v1051, %v1050
        %vm1053 = vnez %v1052
        %vm1054 = vmpackc.low %vm861, %vm860
        %vm1055 = vmpackc.low %vm863, %vm862
        %v1056 = vsel %vm1054, 16711935, 0
        %v1057 = vsel %vm1055, 16711935, 0
        %v1058 = vpack.c.b8 %v1057, %v1056
        %vm1059 = vnez %v1058
        %vm1060 = vmpackc.low %vm865, %vm864
        %vm1061 = vmpackc.low %vm867, %vm866
        %v1062 = vsel %vm1060, 16711935, 0
        %v1063 = vsel %vm1061, 16711935, 0
        %v1064 = vpack.c.b8 %v1063, %v1062
        %vm1065 = vnez %v1064
        %vm1066 = vmpackc.low %vm869, %vm868
        %vm1067 = vmpackc.low %vm871, %vm870
        %v1068 = vsel %vm1066, 16711935, 0
        %v1069 = vsel %vm1067, 16711935, 0
        %v1070 = vpack.c.b8 %v1069, %v1068
        %vm1071 = vnez %v1070
        %vm1072 = vmpackc.low %vm873, %vm872
        %vm1073 = vmpackc.low %vm875, %vm874
        %v1074 = vsel %vm1072, 16711935, 0
        %v1075 = vsel %vm1073, 16711935, 0
        %v1076 = vpack.c.b8 %v1075, %v1074
        %vm1077 = vnez %v1076
        %vm1078 = vmpackc.low %vm877, %vm876
        %vm1079 = vmpackc.low %vm879, %vm878
        %v1080 = vsel %vm1078, 16711935, 0
        %v1081 = vsel %vm1079, 16711935, 0
        %v1082 = vpack.c.b8 %v1081, %v1080
        %vm1083 = vnez %v1082
        %vm1084 = vmpackc.low %vm881, %vm880
        %vm1085 = vmpackc.low %vm883, %vm882
        %v1086 = vsel %vm1084, 16711935, 0
        %v1087 = vsel %vm1085, 16711935, 0
        %v1088 = vpack.c.b8 %v1087, %v1086
        %vm1089 = vnez %v1088
        %vm1090 = vmpackc.low %vm885, %vm884
        %vm1091 = vmpackc.low %vm887, %vm886
        %v1092 = vsel %vm1090, 16711935, 0
        %v1093 = vsel %vm1091, 16711935, 0
        %v1094 = vpack.c.b8 %v1093, %v1092
        %vm1095 = vnez %v1094
        %v1096 = vsel %vm1053, 16843009, 0
        %v1097 = vsel %vm1059, 16843009, 0
        %v1098 = vsel %vm1065, 16843009, 0
        %v1099 = vsel %vm1071, 16843009, 0
        %v1100 = vsel %vm1077, 16843009, 0
        %v1101 = vsel %vm1083, 16843009, 0
        %v1102 = vsel %vm1089, 16843009, 0
        %v1103 = vsel %vm1095, 16843009, 0
        %s1104 = scalar_lea.vmem %s229, 64 [#allocation8]
        %1105 = vst [vmem:[%s1104] sm:$0xff] %v1096
        %1106 = vst [vmem:[%s1104 + $0x8] sm:$0xff] %v1097
        %1107 = vst [vmem:[%s1104 + $0x10] sm:$0xff] %v1098
        %1108 = vst [vmem:[%s1104 + $0x18] sm:$0xff] %v1099
        %1109 = vst [vmem:[%s1104 + $0x20] sm:$0xff] %v1100
        %1110 = vst [vmem:[%s1104 + $0x28] sm:$0xff] %v1101
        %1111 = vst [vmem:[%s1104 + $0x30] sm:$0xff] %v1102
        %1112 = vst [vmem:[%s1104 + $0x38] sm:$0xff] %v1103
        %vm1113 = vmpackc.low %vm889, %vm888
        %vm1114 = vmpackc.low %vm891, %vm890
        %v1115 = vsel %vm1113, 16711935, 0
        %v1116 = vsel %vm1114, 16711935, 0
        %v1117 = vpack.c.b8 %v1116, %v1115
        %vm1118 = vnez %v1117
        %vm1119 = vmpackc.low %vm893, %vm892
        %vm1120 = vmpackc.low %vm895, %vm894
        %v1121 = vsel %vm1119, 16711935, 0
        %v1122 = vsel %vm1120, 16711935, 0
        %v1123 = vpack.c.b8 %v1122, %v1121
        %vm1124 = vnez %v1123
        %vm1125 = vmpackc.low %vm897, %vm896
        %vm1126 = vmpackc.low %vm899, %vm898
        %v1127 = vsel %vm1125, 16711935, 0
        %v1128 = vsel %vm1126, 16711935, 0
        %v1129 = vpack.c.b8 %v1128, %v1127
        %vm1130 = vnez %v1129
        %vm1131 = vmpackc.low %vm901, %vm900
        %vm1132 = vmpackc.low %vm903, %vm902
        %v1133 = vsel %vm1131, 16711935, 0
        %v1134 = vsel %vm1132, 16711935, 0
        %v1135 = vpack.c.b8 %v1134, %v1133
        %vm1136 = vnez %v1135
        %vm1137 = vmpackc.low %vm905, %vm904
        %vm1138 = vmpackc.low %vm907, %vm906
        %v1139 = vsel %vm1137, 16711935, 0
        %v1140 = vsel %vm1138, 16711935, 0
        %v1141 = vpack.c.b8 %v1140, %v1139
        %vm1142 = vnez %v1141
        %vm1143 = vmpackc.low %vm909, %vm908
        %vm1144 = vmpackc.low %vm911, %vm910
        %v1145 = vsel %vm1143, 16711935, 0
        %v1146 = vsel %vm1144, 16711935, 0
        %v1147 = vpack.c.b8 %v1146, %v1145
        %vm1148 = vnez %v1147
        %vm1149 = vmpackc.low %vm913, %vm912
        %vm1150 = vmpackc.low %vm915, %vm914
        %v1151 = vsel %vm1149, 16711935, 0
        %v1152 = vsel %vm1150, 16711935, 0
        %v1153 = vpack.c.b8 %v1152, %v1151
        %vm1154 = vnez %v1153
        %vm1155 = vmpackc.low %vm917, %vm916
        %vm1156 = vmpackc.low %vm919, %vm918
        %v1157 = vsel %vm1155, 16711935, 0
        %v1158 = vsel %vm1156, 16711935, 0
        %v1159 = vpack.c.b8 %v1158, %v1157
        %vm1160 = vnez %v1159
        %v1161 = vsel %vm1118, 16843009, 0
        %v1162 = vsel %vm1124, 16843009, 0
        %v1163 = vsel %vm1130, 16843009, 0
        %v1164 = vsel %vm1136, 16843009, 0
        %v1165 = vsel %vm1142, 16843009, 0
        %v1166 = vsel %vm1148, 16843009, 0
        %v1167 = vsel %vm1154, 16843009, 0
        %v1168 = vsel %vm1160, 16843009, 0
        %s1169 = scalar_lea.vmem %s229, 128 [#allocation8]
        %1170 = vst [vmem:[%s1169] sm:$0xff] %v1161
        %1171 = vst [vmem:[%s1169 + $0x8] sm:$0xff] %v1162
        %1172 = vst [vmem:[%s1169 + $0x10] sm:$0xff] %v1163
        %1173 = vst [vmem:[%s1169 + $0x18] sm:$0xff] %v1164
        %1174 = vst [vmem:[%s1169 + $0x20] sm:$0xff] %v1165
        %1175 = vst [vmem:[%s1169 + $0x28] sm:$0xff] %v1166
        %1176 = vst [vmem:[%s1169 + $0x30] sm:$0xff] %v1167
        %1177 = vst [vmem:[%s1169 + $0x38] sm:$0xff] %v1168
        %s1178 = sand.u32 %s100, 1
        %s1179 = scalar_lea.sflag [#allocation3], %s1178
        %s1180 = sand.u32 %s100, 1
        %s1181 = smul.addr %s1180, 256
        %s1182 = scalar_lea.vmem [#allocation7], %s1181
        %s1183 = sand.u32 %s126, 1
        %s1184 = scalar_lea.sflag [#allocation9], %s1183
        %s1185 = sand.u32 %s126, 1
        %s1186 = smul.addr %s1185, 192
        %s1187 = scalar_lea.vmem [#allocation8], %s1186
        // Predicated region
        $region41: #{vessel_intensity_synth1_forward.1} parent=31 // pred_check
          %p1188 = pneg %p110
        $region42: #{vessel_intensity_synth1_forward.1} parent=31 // pred_check_branch
          %1190 = sbr.rel (%p1188) target = $region44
        $region43: #{vessel_intensity_synth1_forward.1} parent=31 // pred_region
          %s1191 = smul.u32 8, %s24
          %1193 = vsyncadd %s1179, 0
          %s1194 = smul.addr %s1191, 4
          %s1195 = smul.addr %s1194, 8
          %s1196 = scalar_lea.hbm %s3, %s1195
          %s1197 = sshll.u32 %s1182, 4
          %s1198 = int_to_ptr.vmem [resolvable:$true] %s1197
          %s1199 = sshll.u32 %s1196, 4
          %s1200 = int_to_ptr.hbm [resolvable:$true] %s1199
          %1205 = dma.vmem_to_hbm [thread:$0]  %s1198, 4096, %s1200, %s1179, 128, 128, 8
        $region44: #{vessel_intensity_synth1_forward.1} parent=31 // pred_fallthru
          _
        // Predicated region
        $region45: #{vessel_intensity_synth1_forward.1} parent=31 // pred_check
          %p1206 = pneg %p136
        $region46: #{vessel_intensity_synth1_forward.1} parent=31 // pred_check_branch
          %1208 = sbr.rel (%p1206) target = $region48
        $region47: #{vessel_intensity_synth1_forward.1} parent=31 // pred_region
          #allocation11 [shape = 'u32[6]{0}', space=smem, size = 0x18, scoped, tag = 'DMA stride descriptor']
          %s1209 = smul.u32 8, %s24
          %1211 = vsyncadd %s1184, 0
          %s1212 = smul.addr %s1209, 8
          %s1213 = scalar_lea.hbm %s4, %s1212
          %s1215 = sshll.u32 1, 14
          %s1216 = sxor.u32 4294967295, %s1215
          %s1219 = sshll.u32 7, 18
          %s1220 = sxor.u32 4294967295, %s1219
          %s1221 = sand.u32 0, %s1220
          %s1223 = sor.u32 %s1221, 0
          %s1224 = sshll.u32 %s1187, 4
          %s1225 = int_to_ptr.vmem [resolvable:$true] %s1224
          %s1226 = sshll.u32 %s1213, 4
          %s1227 = int_to_ptr.hbm [resolvable:$true] %s1226
          %1233 = sst [smem:[#allocation11]] 1024
          %s1234 = scalar_lea.smem [#allocation11], 1
          %1235 = sst [smem:[%s1234]] 4096
          %s1236 = scalar_lea.smem [#allocation11], 2
          %1237 = sst [smem:[%s1236]] 8
          %s1238 = scalar_lea.smem [#allocation11], 3
          %1239 = sst [smem:[%s1238]] 128
          %s1240 = scalar_lea.smem [#allocation11], 4
          %1241 = sst [smem:[%s1240]] 128
          %s1242 = scalar_lea.smem [#allocation11], 5
          %1243 = sst [smem:[%s1242]] 8
          %1245 = dma.general %s1225, 3072, %s1227, %s1184, [#allocation10], [#allocation11], %s1223, 0
        $region48: #{vessel_intensity_synth1_forward.1} parent=31 // pred_fallthru
          _
      $region32: #{vessel_intensity_synth1_forward.1} parent=5 // pred_fallthru
        _
      %p1246 = scmp.le.s32.totalorder 2, %s19
      // Predicated region
      $region49: #{vessel_intensity_synth1_forward.1} parent=5 // pred_check
        %p1247 = pneg %p1246
      $region50: #{vessel_intensity_synth1_forward.1} parent=5 // pred_check_branch
        %1249 = sbr.rel (%p1247) target = $region52
      $region51: #{vessel_intensity_synth1_forward.1} parent=5 // pred_region
        %s1250 = ssub.s32 %s19, 2
        // Predicated region
        $region53: #{vessel_intensity_synth1_forward.1} parent=51 // pred_check
          %p1251 = pneg %p116
        $region54: #{vessel_intensity_synth1_forward.1} parent=51 // pred_check_branch
          %1253 = sbr.rel (%p1251) target = $region56
        $region55: #{vessel_intensity_synth1_forward.1} parent=51 // pred_region
          %s1254 = sand.u32 %s101, 1
          %s1255 = scalar_lea.sflag [#allocation3], %s1254
          %s1256 = sand.u32 %s101, 1
          %s1257 = smul.addr %s1256, 256
          %s1258 = scalar_lea.vmem [#allocation7], %s1257
          %1260 = dma.done %s1255, 4096
        $region56: #{vessel_intensity_synth1_forward.1} parent=51 // pred_fallthru
          _
        // Predicated region
        $region57: #{vessel_intensity_synth1_forward.1} parent=51 // pred_check
          %p1261 = pneg %p142
        $region58: #{vessel_intensity_synth1_forward.1} parent=51 // pred_check_branch
          %1263 = sbr.rel (%p1261) target = $region60
        $region59: #{vessel_intensity_synth1_forward.1} parent=51 // pred_region
          %s1264 = sand.u32 %s127, 1
          %s1265 = scalar_lea.sflag [#allocation9], %s1264
          %s1266 = sand.u32 %s127, 1
          %s1267 = smul.addr %s1266, 192
          %s1268 = scalar_lea.vmem [#allocation8], %s1267
          %1270 = dma.done %s1265, 3072
        $region60: #{vessel_intensity_synth1_forward.1} parent=51 // pred_fallthru
          _
      $region52: #{vessel_intensity_synth1_forward.1} parent=5 // pred_fallthru
        _
    $region6: #{vessel_intensity_synth1_forward.1} parent=1 // loop_footer
      %s23 = sadd.s32 1, %s19
    $region7: #{vessel_intensity_synth1_forward.1} parent=1 // loop_footer_branch
      %18 = sbr.rel target = $region3
    $region8: #{vessel_intensity_synth1_forward.1} parent=1 // loop_exit
      _
    %1271 = vsyncpa [#allocation3], 1
    %s1272 = scalar_lea.sflag [#allocation3], 1
    %1273 = vsyncpa %s1272, 1
    %1274 = vsyncpa [#allocation9], 1
    %s1275 = scalar_lea.sflag [#allocation9], 1
    %1276 = vsyncpa %s1275, 1
    %1277 = vsyncpa [#allocation4], 1
    %s1278 = scalar_lea.sflag [#allocation4], 1
    %1279 = vsyncpa %s1278, 1
    %1280 = vsyncpa [#allocation6], 1

</llo_original>
